<compile_context>
chip_gen: v5e
topology: v5e:2x2
jax: 0.10.0
libtpu: 0.0.40
codegen_flags: <defaults>
</compile_context>

<pallas_src>
import jax
import jax.numpy as jnp
from jax.experimental import pallas as pl
from jax.experimental.pallas import tpu as pltpu


def _round_up(x, m):
    return ((x + m - 1) // m) * m


def _num_parallel_tiles():
    """2 batch tiles on v7x (2 TensorCores/chip), 1 on v5e/v6e (single TC)."""
    try:
        kind = jax.devices()[0].device_kind.lower()
    except Exception:
        return 1
    if ("v7" in kind) or ("tpu7" in kind) or ("7x" in kind):
        return 2
    return 1


# ----------------------------- Pallas kernel --------------------------------
def _fused_forward_kernel(uidx_ref, sidx_ref, uembT_ref, sembT_ref,
                          w1u_ref, w1s_ref, b1_ref, w2_ref, b2_ref, o_ref):
    """sigmoid( w2 . relu(W1u^T u + W1s^T s + b1) + b2 ), gather fused in-kernel.

    Batch lives on the 128-lane axis throughout; all parameters are VMEM-resident.
      uidx_ref / sidx_ref : (1, TB)       int32  id rows (lane-dense)
      uembT_ref           : (DIM, U_PAD)  bf16   user embedding table, transposed
      sembT_ref           : (DIM, S_PAD)  bf16   service embedding table, transposed
      w1u_ref / w1s_ref   : (HID, DIM)    bf16   layer-1 weights (split halves)
      b1_ref / w2_ref     : (HID, 1)      f32    (zero in padded hidden rows)
      b2_ref              : (1, 1)        f32
      o_ref               : (1, TB)       f32    lane-dense predictions in [0, 1]
    """
    tb = o_ref.shape[1]
    u_pad = uembT_ref.shape[1]
    s_pad = sembT_ref.shape[1]

    # Embedding gather as a one-hot-on-lanes MXU matmul (exact for bf16 tables:
    # products are 0 or the table value, f32 accumulation over a single hit).
    onehot_u = (jax.lax.broadcasted_iota(jnp.int32, (u_pad, tb), 0)
                == uidx_ref[...]).astype(jnp.bfloat16)            # (U_PAD, TB)
    onehot_s = (jax.lax.broadcasted_iota(jnp.int32, (s_pad, tb), 0)
                == sidx_ref[...]).astype(jnp.bfloat16)            # (S_PAD, TB)
    uT = jnp.dot(uembT_ref[...], onehot_u,
                 preferred_element_type=jnp.float32).astype(jnp.bfloat16)  # (DIM, TB)
    sT = jnp.dot(sembT_ref[...], onehot_s,
                 preferred_element_type=jnp.float32).astype(jnp.bfloat16)  # (DIM, TB)

    # Layer 1 on the MXU, f32 accumulation. Splitting W1 into user/serv halves
    # avoids materializing a sublane-concat of [uT; sT].
    h = (jnp.dot(w1u_ref[...], uT, preferred_element_type=jnp.float32)
         + jnp.dot(w1s_ref[...], sT, preferred_element_type=jnp.float32)
         + b1_ref[...])                                            # (HID, TB)
    h = jnp.maximum(h, 0.0)

    # Layer 2 (single output): VPU multiply + cross-sublane (XLU) reduce —
    # avoids an MXU matmul that would produce a single result column.
    y = jnp.sum(h * w2_ref[...], axis=0, keepdims=True) + b2_ref[...]     # (1, TB)
    o_ref[...] = jax.nn.sigmoid(y).astype(o_ref.dtype)


def metamodel_forward_pallas(uidx, sidx, params, *, tile_b):
    """Fully fused gather + MLP head; 1-D 'parallel' grid over batch tiles."""
    uembT, sembT, w1u_t, w1s_t, b1, w2, b2 = params
    assert tile_b % 128 == 0, "tile_b must be a multiple of the 128-lane width"
    B_pad = uidx.shape[1]
    assert B_pad % tile_b == 0, "wrapper pads the batch to a tile_b multiple"
    grid = (B_pad // tile_b,)

    DIM, U_PAD = uembT.shape
    _, S_PAD = sembT.shape
    HID = w1u_t.shape[0]

    flops = (2 * B_pad * DIM * (U_PAD + S_PAD)        # one-hot gather matmuls
             + 4 * B_pad * DIM * HID                  # layer 1
             + 4 * B_pad * HID)                       # bias/relu + layer 2
    bytes_accessed = (
        2 * B_pad * 4                                   # indices in
        + B_pad * 4                                     # predictions out
        + 2 * (uembT.size + sembT.size + w1u_t.size + w1s_t.size)
        + 4 * (b1.size + w2.size + b2.size)
    )

    return pl.pallas_call(
        _fused_forward_kernel,
        out_shape=jax.ShapeDtypeStruct((1, B_pad), jnp.float32),
        grid_spec=pltpu.PrefetchScalarGridSpec(
            num_scalar_prefetch=0,
            grid=grid,
            in_specs=[
                pl.BlockSpec((1, tile_b), lambda i: (0, i)),      # user ids (lanes)
                pl.BlockSpec((1, tile_b), lambda i: (0, i)),      # service ids (lanes)
                pl.BlockSpec((DIM, U_PAD), lambda i: (0, 0)),     # user_embed^T  (resident)
                pl.BlockSpec((DIM, S_PAD), lambda i: (0, 0)),     # serv_embed^T  (resident)
                pl.BlockSpec((HID, DIM), lambda i: (0, 0)),       # W1u^T         (resident)
                pl.BlockSpec((HID, DIM), lambda i: (0, 0)),       # W1s^T         (resident)
                pl.BlockSpec((HID, 1), lambda i: (0, 0)),         # b1
                pl.BlockSpec((HID, 1), lambda i: (0, 0)),         # w2 (column)
                pl.BlockSpec((1, 1), lambda i: (0, 0)),           # b2
            ],
            out_specs=pl.BlockSpec((1, tile_b), lambda i: (0, i)),  # lane-dense row
        ),
        compiler_params=pltpu.CompilerParams(
            dimension_semantics=("parallel",),
        ),
        cost_estimate=pl.CostEstimate(
            flops=flops, transcendentals=B_pad, bytes_accessed=bytes_accessed),
    )(uidx, sidx, uembT, sembT, w1u_t, w1s_t, b1, w2, b2)


# --------------------------- MetaModel in JAX --------------------------------
class MetaModelJax:
    """Concrete JAX/Pallas realization of the MetaModel contract."""

    def __init__(self, user_num, serv_num, dim=16, hidden=32, seed=0):
        self.dim = dim
        self.hidden = hidden
        self.hid_pad = _round_up(hidden, 16)          # sublane-aligned; no 128 blow-up
        self.user_pad = _round_up(user_num, 8)
        self.serv_pad = _round_up(serv_num, 8)
        self.n_tiles = _num_parallel_tiles()          # 1 (v5e/v6e) or 2 (v7x)

        k = jax.random.PRNGKey(seed)
        k_ue, k_se, k_w1, k_b1, k_w2, k_b2 = jax.random.split(k, 6)
        # Deterministic parameter init (synthetic; no checkpoint loading).
        self.user_embed = 0.1 * jax.random.normal(k_ue, (user_num, dim), jnp.float32)
        self.serv_embed = 0.1 * jax.random.normal(k_se, (serv_num, dim), jnp.float32)

        in_feat = 2 * dim
        w1 = (1.0 / jnp.sqrt(in_feat)) * jax.random.normal(k_w1, (in_feat, hidden), jnp.float32)
        b1 = 0.01 * jax.random.normal(k_b1, (hidden,), jnp.float32)
        w2 = (1.0 / jnp.sqrt(hidden)) * jax.random.normal(k_w2, (hidden, 1), jnp.float32)
        b2 = 0.01 * jax.random.normal(k_b2, (1,), jnp.float32)

        # Transposed, padded, VMEM-resident layout. Padded table columns and
        # padded hidden rows (zero b1/w2) contribute nothing to the output.
        uembT = jnp.zeros((dim, self.user_pad), jnp.float32).at[:, :user_num].set(self.user_embed.T)
        sembT = jnp.zeros((dim, self.serv_pad), jnp.float32).at[:, :serv_num].set(self.serv_embed.T)
        self.uembT = uembT.astype(jnp.bfloat16)                   # (dim, U_PAD)
        self.sembT = sembT.astype(jnp.bfloat16)                   # (dim, S_PAD)

        w1_pad = jnp.zeros((in_feat, self.hid_pad), jnp.float32).at[:, :hidden].set(w1)
        self.w1u_t = w1_pad[:dim].T.astype(jnp.bfloat16)          # (HID_PAD, dim)
        self.w1s_t = w1_pad[dim:].T.astype(jnp.bfloat16)          # (HID_PAD, dim)
        self.b1 = jnp.zeros((self.hid_pad, 1), jnp.float32).at[:hidden, 0].set(b1)
        self.w2 = jnp.zeros((self.hid_pad, 1), jnp.float32).at[:hidden, 0].set(w2[:, 0])
        self.b2 = b2.reshape(1, 1)

    def prepare_test_model(self):
        pass  # matches the abstract hook; nothing to prepare for inference

    def forward(self, inputs, train=True):
        user_idx, serv_idx = inputs  # (B,), (B,) integer ids
        B = user_idx.shape[0]
        # One lane-aligned tile per TensorCore; the whole batch fits in one
        # (v5e/v6e) or two (v7x) grid steps to minimize per-step overhead.
        tile_b = max(128, _round_up(pl.cdiv(B, self.n_tiles), 128))
        B_pad = tile_b * self.n_tiles
        pad = B_pad - B
        uidx = jnp.pad(user_idx.astype(jnp.int32), (0, pad)).reshape(1, B_pad)
        sidx = jnp.pad(serv_idx.astype(jnp.int32), (0, pad)).reshape(1, B_pad)

        pred = metamodel_forward_pallas(
            uidx, sidx,
            (self.uembT, self.sembT, self.w1u_t, self.w1s_t, self.b1, self.w2, self.b2),
            tile_b=tile_b)                               # (1, B_pad)
        return pred[0, :B]                               # (B,) like the PyTorch pred


# ---------------------------------- main -------------------------------------
if __name__ == "__main__":
    user_num, serv_num = 32, 48
    batch = 1000           # non-multiple of 128: exercises tail padding

    model = MetaModelJax(user_num, serv_num, dim=16, hidden=32, seed=0)

    key = jax.random.PRNGKey(0)
    ku, ks = jax.random.split(key)
    user_idx = jax.random.randint(ku, (batch,), 0, user_num, dtype=jnp.int32)
    serv_idx = jax.random.randint(ks, (batch,), 0, serv_num, dtype=jnp.int32)

    pred = model.forward((user_idx, serv_idx), train=False)
    pred = jax.block_until_ready(pred)

    # Pure-JAX reference with the same bf16 parameter quantization as the kernel.
    ue_q = model.uembT.astype(jnp.float32).T[:user_num]          # (U, dim)
    se_q = model.sembT.astype(jnp.float32).T[:serv_num]          # (S, dim)
    u = ue_q[user_idx]
    s = se_q[serv_idx]
    x = jnp.concatenate([u, s], axis=-1)                         # (B, 2*dim)
    w1f = jnp.concatenate([model.w1u_t, model.w1s_t], axis=1).astype(jnp.float32)  # (HID_PAD, 2*dim)
    h = jnp.maximum(x @ w1f.T + model.b1[:, 0], 0.0)             # (B, HID_PAD)
    y = jnp.sum(h * model.w2[:, 0][None, :], axis=-1) + model.b2[0, 0]
    ref = jax.nn.sigmoid(y)

    assert pred.shape == (batch,)
    max_err = float(jnp.max(jnp.abs(pred - ref)))
    assert jnp.allclose(pred, ref, atol=1e-3, rtol=1e-3), max_err

    print("KERNEL_OK")
</pallas_src>

<mosaic_0001>
module attributes {stable_mosaic.version = 11 : i64} {
  func.func @_fused_forward_kernel(%arg0: i32, %arg1: memref<1x1024xi32, #tpu.memory_space<vmem>>, %arg2: memref<1x1024xi32, #tpu.memory_space<vmem>>, %arg3: memref<16x32xbf16, #tpu.memory_space<vmem>>, %arg4: memref<16x48xbf16, #tpu.memory_space<vmem>>, %arg5: memref<32x16xbf16, #tpu.memory_space<vmem>>, %arg6: memref<32x16xbf16, #tpu.memory_space<vmem>>, %arg7: memref<32x1xf32, #tpu.memory_space<vmem>>, %arg8: memref<32x1xf32, #tpu.memory_space<vmem>>, %arg9: memref<1x1xf32, #tpu.memory_space<vmem>>, %arg10: memref<1x1024xf32, #tpu.memory_space<vmem>>) attributes {dimension_semantics = [#tpu.dimension_semantics<parallel>], iteration_bounds = array<i64: 1>, scalar_prefetch = 0 : i64, scratch_operands = 0 : i64, tpu.core_type = #tpu.core_type<tc>, window_params = [{transform_indices = @transform_0, window_bounds = array<i64: 1, 1024>}, {transform_indices = @transform_1, window_bounds = array<i64: 1, 1024>}, {pipeline_mode = #tpu.pipeline_mode<synchronous>, transform_indices = @transform_2, window_bounds = array<i64: 16, 32>}, {pipeline_mode = #tpu.pipeline_mode<synchronous>, transform_indices = @transform_3, window_bounds = array<i64: 16, 48>}, {pipeline_mode = #tpu.pipeline_mode<synchronous>, transform_indices = @transform_4, window_bounds = array<i64: 32, 16>}, {pipeline_mode = #tpu.pipeline_mode<synchronous>, transform_indices = @transform_5, window_bounds = array<i64: 32, 16>}, {pipeline_mode = #tpu.pipeline_mode<synchronous>, transform_indices = @transform_6, window_bounds = array<i64: 32, 1>}, {pipeline_mode = #tpu.pipeline_mode<synchronous>, transform_indices = @transform_7, window_bounds = array<i64: 32, 1>}, {pipeline_mode = #tpu.pipeline_mode<synchronous>, transform_indices = @transform_8, window_bounds = array<i64: 1, 1>}, {transform_indices = @transform_9, window_bounds = array<i64: 1, 1024>}]} {
    %0 = tpu.iota {dimensions = array<i32: 0>} : vector<32x1024xi32>
    %c0 = arith.constant 0 : index
    %c0_0 = arith.constant 0 : index
    %1 = vector.load %arg1[%c0, %c0_0] : memref<1x1024xi32, #tpu.memory_space<vmem>>, vector<1x1024xi32>
    %2 = vector.broadcast %1 : vector<1x1024xi32> to vector<32x1024xi32>
    %3 = arith.cmpi eq, %0, %2 : vector<32x1024xi32>
    %4 = arith.extui %3 : vector<32x1024xi1> to vector<32x1024xi32>
    %5 = arith.sitofp %4 : vector<32x1024xi32> to vector<32x1024xf32>
    %6 = arith.truncf %5 : vector<32x1024xf32> to vector<32x1024xbf16>
    %7 = tpu.iota {dimensions = array<i32: 0>} : vector<48x1024xi32>
    %c0_1 = arith.constant 0 : index
    %c0_2 = arith.constant 0 : index
    %8 = vector.load %arg2[%c0_1, %c0_2] : memref<1x1024xi32, #tpu.memory_space<vmem>>, vector<1x1024xi32>
    %9 = vector.broadcast %8 : vector<1x1024xi32> to vector<48x1024xi32>
    %10 = arith.cmpi eq, %7, %9 : vector<48x1024xi32>
    %11 = arith.extui %10 : vector<48x1024xi1> to vector<48x1024xi32>
    %12 = arith.sitofp %11 : vector<48x1024xi32> to vector<48x1024xf32>
    %13 = arith.truncf %12 : vector<48x1024xf32> to vector<48x1024xbf16>
    %c0_3 = arith.constant 0 : index
    %c0_4 = arith.constant 0 : index
    %14 = vector.load %arg3[%c0_3, %c0_4] : memref<16x32xbf16, #tpu.memory_space<vmem>>, vector<16x32xbf16>
    %cst = arith.constant dense<0.000000e+00> : vector<16x1024xf32>
    %15 = tpu.matmul %14, %6, %cst {dimension_numbers = #tpu.dot_dimension_numbers<[1], [0], [0], [1], [0, 0, 1, 1], [], []>} : vector<16x32xbf16>, vector<32x1024xbf16>, vector<16x1024xf32> -> vector<16x1024xf32>
    %16 = arith.truncf %15 : vector<16x1024xf32> to vector<16x1024xbf16>
    %c0_5 = arith.constant 0 : index
    %c0_6 = arith.constant 0 : index
    %17 = vector.load %arg4[%c0_5, %c0_6] : memref<16x48xbf16, #tpu.memory_space<vmem>>, vector<16x48xbf16>
    %cst_7 = arith.constant dense<0.000000e+00> : vector<16x1024xf32>
    %18 = tpu.matmul %17, %13, %cst_7 {dimension_numbers = #tpu.dot_dimension_numbers<[1], [0], [0], [1], [0, 0, 1, 1], [], []>} : vector<16x48xbf16>, vector<48x1024xbf16>, vector<16x1024xf32> -> vector<16x1024xf32>
    %19 = arith.truncf %18 : vector<16x1024xf32> to vector<16x1024xbf16>
    %c0_8 = arith.constant 0 : index
    %c0_9 = arith.constant 0 : index
    %20 = vector.load %arg5[%c0_8, %c0_9] : memref<32x16xbf16, #tpu.memory_space<vmem>>, vector<32x16xbf16>
    %cst_10 = arith.constant dense<0.000000e+00> : vector<32x1024xf32>
    %21 = tpu.matmul %20, %16, %cst_10 {dimension_numbers = #tpu.dot_dimension_numbers<[1], [0], [0], [1], [0, 0, 1, 1], [], []>} : vector<32x16xbf16>, vector<16x1024xbf16>, vector<32x1024xf32> -> vector<32x1024xf32>
    %c0_11 = arith.constant 0 : index
    %c0_12 = arith.constant 0 : index
    %22 = vector.load %arg6[%c0_11, %c0_12] : memref<32x16xbf16, #tpu.memory_space<vmem>>, vector<32x16xbf16>
    %cst_13 = arith.constant dense<0.000000e+00> : vector<32x1024xf32>
    %23 = tpu.matmul %22, %19, %cst_13 {dimension_numbers = #tpu.dot_dimension_numbers<[1], [0], [0], [1], [0, 0, 1, 1], [], []>} : vector<32x16xbf16>, vector<16x1024xbf16>, vector<32x1024xf32> -> vector<32x1024xf32>
    %24 = arith.addf %21, %23 : vector<32x1024xf32>
    %c0_14 = arith.constant 0 : index
    %c0_15 = arith.constant 0 : index
    %25 = vector.load %arg7[%c0_14, %c0_15] : memref<32x1xf32, #tpu.memory_space<vmem>>, vector<32x1xf32>
    %26 = vector.broadcast %25 : vector<32x1xf32> to vector<32x1024xf32>
    %27 = arith.addf %24, %26 : vector<32x1024xf32>
    %cst_16 = arith.constant 0.000000e+00 : f32
    %28 = vector.broadcast %cst_16 : f32 to vector<32x1024xf32>
    %29 = arith.maximumf %27, %28 : vector<32x1024xf32>
    %c0_17 = arith.constant 0 : index
    %c0_18 = arith.constant 0 : index
    %30 = vector.load %arg8[%c0_17, %c0_18] : memref<32x1xf32, #tpu.memory_space<vmem>>, vector<32x1xf32>
    %31 = vector.broadcast %30 : vector<32x1xf32> to vector<32x1024xf32>
    %32 = arith.mulf %29, %31 : vector<32x1024xf32>
    %cst_19 = arith.constant dense<0.000000e+00> : vector<1024xf32>
    %33 = vector.multi_reduction <add>, %32, %cst_19 [0] : vector<32x1024xf32> to vector<1024xf32>
    %34 = vector.shape_cast %33 : vector<1024xf32> to vector<1x1024xf32>
    %c0_20 = arith.constant 0 : index
    %c0_21 = arith.constant 0 : index
    %35 = vector.load %arg9[%c0_20, %c0_21] : memref<1x1xf32, #tpu.memory_space<vmem>>, vector<1x1xf32>
    %36 = vector.broadcast %35 : vector<1x1xf32> to vector<1x1024xf32>
    %37 = arith.addf %34, %36 : vector<1x1024xf32>
    %38 = arith.negf %37 : vector<1x1024xf32>
    %39 = math.exp %38 : vector<1x1024xf32>
    %cst_22 = arith.constant 1.000000e+00 : f32
    %40 = vector.broadcast %cst_22 : f32 to vector<1x1024xf32>
    %41 = arith.addf %40, %39 : vector<1x1024xf32>
    %42 = arith.divf %40, %41 : vector<1x1024xf32>
    %c0_23 = arith.constant 0 : index
    %c0_24 = arith.constant 0 : index
    %43 = vector.load %arg10[%c0_23, %c0_24] : memref<1x1024xf32, #tpu.memory_space<vmem>>, vector<1x1024xf32>
    tpu.vector_store %arg10[%c0_23, %c0_24], %42 {strides = array<i32>} : memref<1x1024xf32, #tpu.memory_space<vmem>>, vector<1x1024xf32>,
    return
  }
  func.func @transform_0(%arg0: i32) -> (i32, i32) {
    %c0_i32 = arith.constant 0 : i32
    %c0_i32_0 = arith.constant 0 : i32
    return %c0_i32, %arg0 : i32, i32
  }
  func.func @transform_1(%arg0: i32) -> (i32, i32) {
    %c0_i32 = arith.constant 0 : i32
    %c0_i32_0 = arith.constant 0 : i32
    return %c0_i32, %arg0 : i32, i32
  }
  func.func @transform_2(%arg0: i32) -> (i32, i32) {
    %c0_i32 = arith.constant 0 : i32
    %c0_i32_0 = arith.constant 0 : i32
    %c0_i32_1 = arith.constant 0 : i32
    return %c0_i32, %c0_i32_0 : i32, i32
  }
  func.func @transform_3(%arg0: i32) -> (i32, i32) {
    %c0_i32 = arith.constant 0 : i32
    %c0_i32_0 = arith.constant 0 : i32
    %c0_i32_1 = arith.constant 0 : i32
    return %c0_i32, %c0_i32_0 : i32, i32
  }
  func.func @transform_4(%arg0: i32) -> (i32, i32) {
    %c0_i32 = arith.constant 0 : i32
    %c0_i32_0 = arith.constant 0 : i32
    %c0_i32_1 = arith.constant 0 : i32
    return %c0_i32, %c0_i32_0 : i32, i32
  }
  func.func @transform_5(%arg0: i32) -> (i32, i32) {
    %c0_i32 = arith.constant 0 : i32
    %c0_i32_0 = arith.constant 0 : i32
    %c0_i32_1 = arith.constant 0 : i32
    return %c0_i32, %c0_i32_0 : i32, i32
  }
  func.func @transform_6(%arg0: i32) -> (i32, i32) {
    %c0_i32 = arith.constant 0 : i32
    %c0_i32_0 = arith.constant 0 : i32
    %c0_i32_1 = arith.constant 0 : i32
    return %c0_i32, %c0_i32_0 : i32, i32
  }
  func.func @transform_7(%arg0: i32) -> (i32, i32) {
    %c0_i32 = arith.constant 0 : i32
    %c0_i32_0 = arith.constant 0 : i32
    %c0_i32_1 = arith.constant 0 : i32
    return %c0_i32, %c0_i32_0 : i32, i32
  }
  func.func @transform_8(%arg0: i32) -> (i32, i32) {
    %c0_i32 = arith.constant 0 : i32
    %c0_i32_0 = arith.constant 0 : i32
    %c0_i32_1 = arith.constant 0 : i32
    return %c0_i32, %c0_i32_0 : i32, i32
  }
  func.func @transform_9(%arg0: i32) -> (i32, i32) {
    %c0_i32 = arith.constant 0 : i32
    %c0_i32_0 = arith.constant 0 : i32
    return %c0_i32, %arg0 : i32, i32
  }
}

</mosaic_0001>

<llo_original>
// kernel: tpu_custom_call.1
$region0: #{tpu_custom_call.1}
  #allocation0 [shape = 'u32[]', space=smem, size = 0x4, offset = 0x4, fixed_abs, tag = 'smem constant byte address 0x4 - core index']
  #allocation1 [shape = 'u32[72,128]{1,0:T(1,128)}', space=vmem, size = 0x9000, scoped, tag = 'internal scratch']
  #allocation2 [shape = 'f32[1,1]{1,0:T(1,128)S(1)}', space=vmem, size = 0x200, scoped, tag = 'scoped memory for tpu_custom_call.1']
  %s0 = inlined_call_operand.vmem [shape: s32[1,1024], index: 0, kind: input, shape index: {}]
  %s1 = inlined_call_operand.vmem [shape: s32[1,1024], index: 1, kind: input, shape index: {}]
  %s2 = inlined_call_operand.vmem [shape: bf16[16,32], index: 2, kind: input, shape index: {}]
  %s3 = inlined_call_operand.vmem [shape: bf16[16,48], index: 3, kind: input, shape index: {}]
  %s4 = inlined_call_operand.vmem [shape: bf16[32,16], index: 4, kind: input, shape index: {}]
  %s5 = inlined_call_operand.vmem [shape: bf16[32,16], index: 5, kind: input, shape index: {}]
  %s6 = inlined_call_operand.vmem [shape: f32[32,1], index: 6, kind: input, shape index: {}]
  %s7 = inlined_call_operand.vmem [shape: f32[32,1], index: 7, kind: input, shape index: {}]
  %s8 = inlined_call_operand.<no memory space> [shape: f32[1,1], index: 8, kind: input, shape index: {}]
  %s9 = inlined_call_operand.hbm [shape: f32[1,1024], index: 9, kind: output, shape index: {}]
  %s10 = sld [smem:[#allocation0]]
  $region46: #{tpu_custom_call.1} parent=0
    _
  %s12 = ssub.s32 1, %s10
  %s13 = scalar_select 0, %s12, %s10
  %v14 = vstv %s8
  %15 = vst [vmem:[#allocation2] sm:$0x1] %v14
  $region1: #{tpu_custom_call.1} parent=0
    #allocation3 [shape = 'u8[4096]{0}', space=vmem, size = 0x1000, scoped, tag = 'output window, operand 0, single buffered']
    #allocation4 [shape = 's32[1]{0}', space=sflag, size = 0x4, scoped, tag = 'scoped memory for tpu_custom_call.1']
    %16 = vsyncpa [#allocation4], 0
    // Predicated region
    $region2: #{tpu_custom_call.1} parent=1 // pred_check
      _
    $region3: #{tpu_custom_call.1} parent=1 // pred_check_branch
      %18 = sbr.rel (0) target = $region5
    $region4: #{tpu_custom_call.1} parent=1 // pred_region
      _
    $region5: #{tpu_custom_call.1} parent=1 // pred_fallthru
      _
    // Predicated region
    $region6: #{tpu_custom_call.1} parent=1 // pred_check
      _
    $region7: #{tpu_custom_call.1} parent=1 // pred_check_branch
      %20 = sbr.rel (0) target = $region9
    $region8: #{tpu_custom_call.1} parent=1 // pred_region
      _
    $region9: #{tpu_custom_call.1} parent=1 // pred_fallthru
      _
    // Predicated region
    $region10: #{tpu_custom_call.1} parent=1 // pred_check
      _
    $region11: #{tpu_custom_call.1} parent=1 // pred_check_branch
      %22 = sbr.rel (0) target = $region13
    $region12: #{tpu_custom_call.1} parent=1 // pred_region
      _
    $region13: #{tpu_custom_call.1} parent=1 // pred_fallthru
      _
    // Predicated region
    $region14: #{tpu_custom_call.1} parent=1 // pred_check
      _
    $region15: #{tpu_custom_call.1} parent=1 // pred_check_branch
      %24 = sbr.rel (0) target = $region17
    $region16: #{tpu_custom_call.1} parent=1 // pred_region
      _
    $region17: #{tpu_custom_call.1} parent=1 // pred_fallthru
      _
    // Predicated region
    $region18: #{tpu_custom_call.1} parent=1 // pred_check
      _
    $region19: #{tpu_custom_call.1} parent=1 // pred_check_branch
      %26 = sbr.rel (0) target = $region21
    $region20: #{tpu_custom_call.1} parent=1 // pred_region
      _
    $region21: #{tpu_custom_call.1} parent=1 // pred_fallthru
      _
    // Predicated region
    $region22: #{tpu_custom_call.1} parent=1 // pred_check
      _
    $region23: #{tpu_custom_call.1} parent=1 // pred_check_branch
      %28 = sbr.rel (0) target = $region25
    $region24: #{tpu_custom_call.1} parent=1 // pred_region
      _
    $region25: #{tpu_custom_call.1} parent=1 // pred_fallthru
      _
    // Predicated region
    $region26: #{tpu_custom_call.1} parent=1 // pred_check
      _
    $region27: #{tpu_custom_call.1} parent=1 // pred_check_branch
      %30 = sbr.rel (0) target = $region29
    $region28: #{tpu_custom_call.1} parent=1 // pred_region
      _
    $region29: #{tpu_custom_call.1} parent=1 // pred_fallthru
      _
    // Predicated region
    $region30: #{tpu_custom_call.1} parent=1 // pred_check
      _
    $region31: #{tpu_custom_call.1} parent=1 // pred_check_branch
      %32 = sbr.rel (0) target = $region33
    $region32: #{tpu_custom_call.1} parent=1 // pred_region
      _
    $region33: #{tpu_custom_call.1} parent=1 // pred_fallthru
      _
    // Predicated region
    $region34: #{tpu_custom_call.1} parent=1 // pred_check
      _
    $region35: #{tpu_custom_call.1} parent=1 // pred_check_branch
      %34 = sbr.rel (0) target = $region37
    $region36: #{tpu_custom_call.1} parent=1 // pred_region
      _
    $region37: #{tpu_custom_call.1} parent=1 // pred_fallthru
      _
    %v36 = vlaneseq
    %v37 = vshrl.u32 %v36, 7
    %v38 = vadd.s32 %v37, 8
    %v39 = vadd.s32 %v37, 16
    %v40 = vadd.s32 %v37, 24
    %v41 = vld [vmem:[%s0] sm:$0xff]
    %v42 = vperm.slane %v41, 0
    %v43 = vperm.slane %v41, 1
    %v44 = vperm.slane %v41, 2
    %v45 = vperm.slane %v41, 3
    %v46 = vperm.slane %v41, 4
    %v47 = vperm.slane %v41, 5
    %v48 = vperm.slane %v41, 6
    %v49 = vperm.slane %v41, 7
    %vm50 = vcmp.eq.s32.totalorder %v37, %v42
    %vm51 = vcmp.eq.s32.totalorder %v37, %v43
    %vm52 = vcmp.eq.s32.totalorder %v37, %v44
    %vm53 = vcmp.eq.s32.totalorder %v37, %v45
    %vm54 = vcmp.eq.s32.totalorder %v37, %v46
    %vm55 = vcmp.eq.s32.totalorder %v37, %v47
    %vm56 = vcmp.eq.s32.totalorder %v37, %v48
    %vm57 = vcmp.eq.s32.totalorder %v37, %v49
    %vm58 = vcmp.eq.s32.totalorder %v38, %v42
    %vm59 = vcmp.eq.s32.totalorder %v38, %v43
    %vm60 = vcmp.eq.s32.totalorder %v38, %v44
    %vm61 = vcmp.eq.s32.totalorder %v38, %v45
    %vm62 = vcmp.eq.s32.totalorder %v38, %v46
    %vm63 = vcmp.eq.s32.totalorder %v38, %v47
    %vm64 = vcmp.eq.s32.totalorder %v38, %v48
    %vm65 = vcmp.eq.s32.totalorder %v38, %v49
    %vm66 = vcmp.eq.s32.totalorder %v39, %v42
    %vm67 = vcmp.eq.s32.totalorder %v39, %v43
    %vm68 = vcmp.eq.s32.totalorder %v39, %v44
    %vm69 = vcmp.eq.s32.totalorder %v39, %v45
    %vm70 = vcmp.eq.s32.totalorder %v39, %v46
    %vm71 = vcmp.eq.s32.totalorder %v39, %v47
    %vm72 = vcmp.eq.s32.totalorder %v39, %v48
    %vm73 = vcmp.eq.s32.totalorder %v39, %v49
    %vm74 = vcmp.eq.s32.totalorder %v40, %v42
    %vm75 = vcmp.eq.s32.totalorder %v40, %v43
    %vm76 = vcmp.eq.s32.totalorder %v40, %v44
    %vm77 = vcmp.eq.s32.totalorder %v40, %v45
    %vm78 = vcmp.eq.s32.totalorder %v40, %v46
    %vm79 = vcmp.eq.s32.totalorder %v40, %v47
    %vm80 = vcmp.eq.s32.totalorder %v40, %v48
    %vm81 = vcmp.eq.s32.totalorder %v40, %v49
    %v82 = vsel %vm50, 1, 0
    %v83 = vsel %vm51, 1, 0
    %v84 = vsel %vm52, 1, 0
    %v85 = vsel %vm53, 1, 0
    %v86 = vsel %vm54, 1, 0
    %v87 = vsel %vm55, 1, 0
    %v88 = vsel %vm56, 1, 0
    %v89 = vsel %vm57, 1, 0
    %v90 = vsel %vm58, 1, 0
    %v91 = vsel %vm59, 1, 0
    %v92 = vsel %vm60, 1, 0
    %v93 = vsel %vm61, 1, 0
    %v94 = vsel %vm62, 1, 0
    %v95 = vsel %vm63, 1, 0
    %v96 = vsel %vm64, 1, 0
    %v97 = vsel %vm65, 1, 0
    %v98 = vsel %vm66, 1, 0
    %v99 = vsel %vm67, 1, 0
    %v100 = vsel %vm68, 1, 0
    %v101 = vsel %vm69, 1, 0
    %v102 = vsel %vm70, 1, 0
    %v103 = vsel %vm71, 1, 0
    %v104 = vsel %vm72, 1, 0
    %v105 = vsel %vm73, 1, 0
    %v106 = vsel %vm74, 1, 0
    %v107 = vsel %vm75, 1, 0
    %v108 = vsel %vm76, 1, 0
    %v109 = vsel %vm77, 1, 0
    %v110 = vsel %vm78, 1, 0
    %v111 = vsel %vm79, 1, 0
    %v112 = vsel %vm80, 1, 0
    %v113 = vsel %vm81, 1, 0
    %v114 = vcvt.s32.f32 %v82
    %v115 = vcvt.s32.f32 %v83
    %v116 = vcvt.s32.f32 %v84
    %v117 = vcvt.s32.f32 %v85
    %v118 = vcvt.s32.f32 %v86
    %v119 = vcvt.s32.f32 %v87
    %v120 = vcvt.s32.f32 %v88
    %v121 = vcvt.s32.f32 %v89
    %v122 = vcvt.s32.f32 %v90
    %v123 = vcvt.s32.f32 %v91
    %v124 = vcvt.s32.f32 %v92
    %v125 = vcvt.s32.f32 %v93
    %v126 = vcvt.s32.f32 %v94
    %v127 = vcvt.s32.f32 %v95
    %v128 = vcvt.s32.f32 %v96
    %v129 = vcvt.s32.f32 %v97
    %v130 = vcvt.s32.f32 %v98
    %v131 = vcvt.s32.f32 %v99
    %v132 = vcvt.s32.f32 %v100
    %v133 = vcvt.s32.f32 %v101
    %v134 = vcvt.s32.f32 %v102
    %v135 = vcvt.s32.f32 %v103
    %v136 = vcvt.s32.f32 %v104
    %v137 = vcvt.s32.f32 %v105
    %v138 = vcvt.s32.f32 %v106
    %v139 = vcvt.s32.f32 %v107
    %v140 = vcvt.s32.f32 %v108
    %v141 = vcvt.s32.f32 %v109
    %v142 = vcvt.s32.f32 %v110
    %v143 = vcvt.s32.f32 %v111
    %v144 = vcvt.s32.f32 %v112
    %v145 = vcvt.s32.f32 %v113
    %v146 = vpack.c.bf16 %v122, %v114
    %v147 = vpack.c.bf16 %v123, %v115
    %v148 = vpack.c.bf16 %v124, %v116
    %v149 = vpack.c.bf16 %v125, %v117
    %v150 = vpack.c.bf16 %v126, %v118
    %v151 = vpack.c.bf16 %v127, %v119
    %v152 = vpack.c.bf16 %v128, %v120
    %v153 = vpack.c.bf16 %v129, %v121
    %v154 = vpack.c.bf16 %v138, %v130
    %v155 = vpack.c.bf16 %v139, %v131
    %v156 = vpack.c.bf16 %v140, %v132
    %v157 = vpack.c.bf16 %v141, %v133
    %v158 = vpack.c.bf16 %v142, %v134
    %v159 = vpack.c.bf16 %v143, %v135
    %v160 = vpack.c.bf16 %v144, %v136
    %v161 = vpack.c.bf16 %v145, %v137
    %v162 = vadd.s32 %v37, 32
    %v163 = vadd.s32 %v37, 40
    %v164 = vld [vmem:[%s1] sm:$0xff]
    %v165 = vperm.slane %v164, 0
    %v166 = vperm.slane %v164, 1
    %v167 = vperm.slane %v164, 2
    %v168 = vperm.slane %v164, 3
    %v169 = vperm.slane %v164, 4
    %v170 = vperm.slane %v164, 5
    %v171 = vperm.slane %v164, 6
    %v172 = vperm.slane %v164, 7
    %vm173 = vcmp.eq.s32.totalorder %v37, %v165
    %vm174 = vcmp.eq.s32.totalorder %v37, %v166
    %vm175 = vcmp.eq.s32.totalorder %v37, %v167
    %vm176 = vcmp.eq.s32.totalorder %v37, %v168
    %vm177 = vcmp.eq.s32.totalorder %v37, %v169
    %vm178 = vcmp.eq.s32.totalorder %v37, %v170
    %vm179 = vcmp.eq.s32.totalorder %v37, %v171
    %vm180 = vcmp.eq.s32.totalorder %v37, %v172
    %vm181 = vcmp.eq.s32.totalorder %v38, %v165
    %vm182 = vcmp.eq.s32.totalorder %v38, %v166
    %vm183 = vcmp.eq.s32.totalorder %v38, %v167
    %vm184 = vcmp.eq.s32.totalorder %v38, %v168
    %vm185 = vcmp.eq.s32.totalorder %v38, %v169
    %vm186 = vcmp.eq.s32.totalorder %v38, %v170
    %vm187 = vcmp.eq.s32.totalorder %v38, %v171
    %vm188 = vcmp.eq.s32.totalorder %v38, %v172
    %vm189 = vcmp.eq.s32.totalorder %v39, %v165
    %vm190 = vcmp.eq.s32.totalorder %v39, %v166
    %vm191 = vcmp.eq.s32.totalorder %v39, %v167
    %vm192 = vcmp.eq.s32.totalorder %v39, %v168
    %vm193 = vcmp.eq.s32.totalorder %v39, %v169
    %vm194 = vcmp.eq.s32.totalorder %v39, %v170
    %vm195 = vcmp.eq.s32.totalorder %v39, %v171
    %vm196 = vcmp.eq.s32.totalorder %v39, %v172
    %vm197 = vcmp.eq.s32.totalorder %v40, %v165
    %vm198 = vcmp.eq.s32.totalorder %v40, %v166
    %vm199 = vcmp.eq.s32.totalorder %v40, %v167
    %vm200 = vcmp.eq.s32.totalorder %v40, %v168
    %vm201 = vcmp.eq.s32.totalorder %v40, %v169
    %vm202 = vcmp.eq.s32.totalorder %v40, %v170
    %vm203 = vcmp.eq.s32.totalorder %v40, %v171
    %vm204 = vcmp.eq.s32.totalorder %v40, %v172
    %vm205 = vcmp.eq.s32.totalorder %v162, %v165
    %vm206 = vcmp.eq.s32.totalorder %v162, %v166
    %vm207 = vcmp.eq.s32.totalorder %v162, %v167
    %vm208 = vcmp.eq.s32.totalorder %v162, %v168
    %vm209 = vcmp.eq.s32.totalorder %v162, %v169
    %vm210 = vcmp.eq.s32.totalorder %v162, %v170
    %vm211 = vcmp.eq.s32.totalorder %v162, %v171
    %vm212 = vcmp.eq.s32.totalorder %v162, %v172
    %vm213 = vcmp.eq.s32.totalorder %v163, %v165
    %vm214 = vcmp.eq.s32.totalorder %v163, %v166
    %vm215 = vcmp.eq.s32.totalorder %v163, %v167
    %vm216 = vcmp.eq.s32.totalorder %v163, %v168
    %vm217 = vcmp.eq.s32.totalorder %v163, %v169
    %vm218 = vcmp.eq.s32.totalorder %v163, %v170
    %vm219 = vcmp.eq.s32.totalorder %v163, %v171
    %vm220 = vcmp.eq.s32.totalorder %v163, %v172
    %v221 = vsel %vm173, 1, 0
    %v222 = vsel %vm174, 1, 0
    %v223 = vsel %vm175, 1, 0
    %v224 = vsel %vm176, 1, 0
    %v225 = vsel %vm177, 1, 0
    %v226 = vsel %vm178, 1, 0
    %v227 = vsel %vm179, 1, 0
    %v228 = vsel %vm180, 1, 0
    %v229 = vsel %vm181, 1, 0
    %v230 = vsel %vm182, 1, 0
    %v231 = vsel %vm183, 1, 0
    %v232 = vsel %vm184, 1, 0
    %v233 = vsel %vm185, 1, 0
    %v234 = vsel %vm186, 1, 0
    %v235 = vsel %vm187, 1, 0
    %v236 = vsel %vm188, 1, 0
    %v237 = vsel %vm189, 1, 0
    %v238 = vsel %vm190, 1, 0
    %v239 = vsel %vm191, 1, 0
    %v240 = vsel %vm192, 1, 0
    %v241 = vsel %vm193, 1, 0
    %v242 = vsel %vm194, 1, 0
    %v243 = vsel %vm195, 1, 0
    %v244 = vsel %vm196, 1, 0
    %v245 = vsel %vm197, 1, 0
    %v246 = vsel %vm198, 1, 0
    %v247 = vsel %vm199, 1, 0
    %v248 = vsel %vm200, 1, 0
    %v249 = vsel %vm201, 1, 0
    %v250 = vsel %vm202, 1, 0
    %v251 = vsel %vm203, 1, 0
    %v252 = vsel %vm204, 1, 0
    %v253 = vsel %vm205, 1, 0
    %v254 = vsel %vm206, 1, 0
    %v255 = vsel %vm207, 1, 0
    %v256 = vsel %vm208, 1, 0
    %v257 = vsel %vm209, 1, 0
    %v258 = vsel %vm210, 1, 0
    %v259 = vsel %vm211, 1, 0
    %v260 = vsel %vm212, 1, 0
    %v261 = vsel %vm213, 1, 0
    %v262 = vsel %vm214, 1, 0
    %v263 = vsel %vm215, 1, 0
    %v264 = vsel %vm216, 1, 0
    %v265 = vsel %vm217, 1, 0
    %v266 = vsel %vm218, 1, 0
    %v267 = vsel %vm219, 1, 0
    %v268 = vsel %vm220, 1, 0
    %v269 = vcvt.s32.f32 %v221
    %v270 = vcvt.s32.f32 %v222
    %v271 = vcvt.s32.f32 %v223
    %v272 = vcvt.s32.f32 %v224
    %v273 = vcvt.s32.f32 %v225
    %v274 = vcvt.s32.f32 %v226
    %v275 = vcvt.s32.f32 %v227
    %v276 = vcvt.s32.f32 %v228
    %v277 = vcvt.s32.f32 %v229
    %v278 = vcvt.s32.f32 %v230
    %v279 = vcvt.s32.f32 %v231
    %v280 = vcvt.s32.f32 %v232
    %v281 = vcvt.s32.f32 %v233
    %v282 = vcvt.s32.f32 %v234
    %v283 = vcvt.s32.f32 %v235
    %v284 = vcvt.s32.f32 %v236
    %v285 = vcvt.s32.f32 %v237
    %v286 = vcvt.s32.f32 %v238
    %v287 = vcvt.s32.f32 %v239
    %v288 = vcvt.s32.f32 %v240
    %v289 = vcvt.s32.f32 %v241
    %v290 = vcvt.s32.f32 %v242
    %v291 = vcvt.s32.f32 %v243
    %v292 = vcvt.s32.f32 %v244
    %v293 = vcvt.s32.f32 %v245
    %v294 = vcvt.s32.f32 %v246
    %v295 = vcvt.s32.f32 %v247
    %v296 = vcvt.s32.f32 %v248
    %v297 = vcvt.s32.f32 %v249
    %v298 = vcvt.s32.f32 %v250
    %v299 = vcvt.s32.f32 %v251
    %v300 = vcvt.s32.f32 %v252
    %v301 = vcvt.s32.f32 %v253
    %v302 = vcvt.s32.f32 %v254
    %v303 = vcvt.s32.f32 %v255
    %v304 = vcvt.s32.f32 %v256
    %v305 = vcvt.s32.f32 %v257
    %v306 = vcvt.s32.f32 %v258
    %v307 = vcvt.s32.f32 %v259
    %v308 = vcvt.s32.f32 %v260
    %v309 = vcvt.s32.f32 %v261
    %v310 = vcvt.s32.f32 %v262
    %v311 = vcvt.s32.f32 %v263
    %v312 = vcvt.s32.f32 %v264
    %v313 = vcvt.s32.f32 %v265
    %v314 = vcvt.s32.f32 %v266
    %v315 = vcvt.s32.f32 %v267
    %v316 = vcvt.s32.f32 %v268
    %v317 = vpack.c.bf16 %v277, %v269
    %v318 = vpack.c.bf16 %v278, %v270
    %v319 = vpack.c.bf16 %v279, %v271
    %v320 = vpack.c.bf16 %v280, %v272
    %v321 = vpack.c.bf16 %v281, %v273
    %v322 = vpack.c.bf16 %v282, %v274
    %v323 = vpack.c.bf16 %v283, %v275
    %v324 = vpack.c.bf16 %v284, %v276
    %v325 = vpack.c.bf16 %v293, %v285
    %v326 = vpack.c.bf16 %v294, %v286
    %v327 = vpack.c.bf16 %v295, %v287
    %v328 = vpack.c.bf16 %v296, %v288
    %v329 = vpack.c.bf16 %v297, %v289
    %v330 = vpack.c.bf16 %v298, %v290
    %v331 = vpack.c.bf16 %v299, %v291
    %v332 = vpack.c.bf16 %v300, %v292
    %v333 = vpack.c.bf16 %v309, %v301
    %v334 = vpack.c.bf16 %v310, %v302
    %v335 = vpack.c.bf16 %v311, %v303
    %v336 = vpack.c.bf16 %v312, %v304
    %v337 = vpack.c.bf16 %v313, %v305
    %v338 = vpack.c.bf16 %v314, %v306
    %v339 = vpack.c.bf16 %v315, %v307
    %v340 = vpack.c.bf16 %v316, %v308
    %v341 = vld [vmem:[%s2] sm:$0xf]
    %v342 = vld [vmem:[%s2 + $0x4] sm:$0xf]
    %v345 = vunpack.c.l.b16 %v341
    %v346 = vunpack.c.l.b16 %v342
    %v347 = vpack.c.b16 %v346, %v345
    %vm348 = vcmask 261120
    %v350 = vsel %vm348, %v347, 0
    %352 = vmatpush.bf16.msra.mxu0 0
    %353 = vmatpush.bf16.msra.mxu0 0
    %354 = vmatpush.bf16.msra.mxu0 0
    %355 = vmatpush.bf16.msra.mxu0 0
    %356 = vmatpush.bf16.msra.mxu0 0
    %357 = vmatpush.bf16.msra.mxu0 0
    %358 = vmatpush.bf16.msra.mxu0 %v154
    %359 = vmatpush.bf16.msra.mxu0 %v146
    %360 = vmatmul.bf16.gmra.mxu0 %v350
    %v361 = vpop.f32.mrf.mxu0
    %v362 = vadd.f32 0.0, %v361
    %v363 = vpop.f32.mrf.mxu0
    %v364 = vadd.f32 0.0, %v363
    %365 = vdwg.mxu0
    %366 = vmatpush.bf16.msra.mxu0 0
    %367 = vmatpush.bf16.msra.mxu0 0
    %368 = vmatpush.bf16.msra.mxu0 0
    %369 = vmatpush.bf16.msra.mxu0 0
    %370 = vmatpush.bf16.msra.mxu0 0
    %371 = vmatpush.bf16.msra.mxu0 0
    %372 = vmatpush.bf16.msra.mxu0 %v155
    %373 = vmatpush.bf16.msra.mxu0 %v147
    %374 = vmatmul.bf16.gmra.mxu0 %v350
    %v375 = vpop.f32.mrf.mxu0
    %v376 = vadd.f32 0.0, %v375
    %v377 = vpop.f32.mrf.mxu0
    %v378 = vadd.f32 0.0, %v377
    %379 = vdwg.mxu0
    %380 = vmatpush.bf16.msra.mxu0 0
    %381 = vmatpush.bf16.msra.mxu0 0
    %382 = vmatpush.bf16.msra.mxu0 0
    %383 = vmatpush.bf16.msra.mxu0 0
    %384 = vmatpush.bf16.msra.mxu0 0
    %385 = vmatpush.bf16.msra.mxu0 0
    %386 = vmatpush.bf16.msra.mxu0 %v156
    %387 = vmatpush.bf16.msra.mxu0 %v148
    %388 = vmatmul.bf16.gmra.mxu0 %v350
    %v389 = vpop.f32.mrf.mxu0
    %v390 = vadd.f32 0.0, %v389
    %v391 = vpop.f32.mrf.mxu0
    %v392 = vadd.f32 0.0, %v391
    %393 = vdwg.mxu0
    %394 = vmatpush.bf16.msra.mxu0 0
    %395 = vmatpush.bf16.msra.mxu0 0
    %396 = vmatpush.bf16.msra.mxu0 0
    %397 = vmatpush.bf16.msra.mxu0 0
    %398 = vmatpush.bf16.msra.mxu0 0
    %399 = vmatpush.bf16.msra.mxu0 0
    %400 = vmatpush.bf16.msra.mxu0 %v157
    %401 = vmatpush.bf16.msra.mxu0 %v149
    %402 = vmatmul.bf16.gmra.mxu0 %v350
    %v403 = vpop.f32.mrf.mxu0
    %v404 = vadd.f32 0.0, %v403
    %v405 = vpop.f32.mrf.mxu0
    %v406 = vadd.f32 0.0, %v405
    %407 = vdwg.mxu0
    %408 = vmatpush.bf16.msra.mxu0 0
    %409 = vmatpush.bf16.msra.mxu0 0
    %410 = vmatpush.bf16.msra.mxu0 0
    %411 = vmatpush.bf16.msra.mxu0 0
    %412 = vmatpush.bf16.msra.mxu0 0
    %413 = vmatpush.bf16.msra.mxu0 0
    %414 = vmatpush.bf16.msra.mxu0 %v158
    %415 = vmatpush.bf16.msra.mxu0 %v150
    %416 = vmatmul.bf16.gmra.mxu0 %v350
    %v417 = vpop.f32.mrf.mxu0
    %v418 = vadd.f32 0.0, %v417
    %v419 = vpop.f32.mrf.mxu0
    %v420 = vadd.f32 0.0, %v419
    %421 = vdwg.mxu0
    %422 = vmatpush.bf16.msra.mxu0 0
    %423 = vmatpush.bf16.msra.mxu0 0
    %424 = vmatpush.bf16.msra.mxu0 0
    %425 = vmatpush.bf16.msra.mxu0 0
    %426 = vmatpush.bf16.msra.mxu0 0
    %427 = vmatpush.bf16.msra.mxu0 0
    %428 = vmatpush.bf16.msra.mxu0 %v159
    %429 = vmatpush.bf16.msra.mxu0 %v151
    %430 = vmatmul.bf16.gmra.mxu0 %v350
    %v431 = vpop.f32.mrf.mxu0
    %v432 = vadd.f32 0.0, %v431
    %v433 = vpop.f32.mrf.mxu0
    %v434 = vadd.f32 0.0, %v433
    %435 = vdwg.mxu0
    %436 = vmatpush.bf16.msra.mxu0 0
    %437 = vmatpush.bf16.msra.mxu0 0
    %438 = vmatpush.bf16.msra.mxu0 0
    %439 = vmatpush.bf16.msra.mxu0 0
    %440 = vmatpush.bf16.msra.mxu0 0
    %441 = vmatpush.bf16.msra.mxu0 0
    %442 = vmatpush.bf16.msra.mxu0 %v160
    %443 = vmatpush.bf16.msra.mxu0 %v152
    %444 = vmatmul.bf16.gmra.mxu0 %v350
    %v445 = vpop.f32.mrf.mxu0
    %v446 = vadd.f32 0.0, %v445
    %v447 = vpop.f32.mrf.mxu0
    %v448 = vadd.f32 0.0, %v447
    %449 = vdwg.mxu0
    %450 = vmatpush.bf16.msra.mxu0 0
    %451 = vmatpush.bf16.msra.mxu0 0
    %452 = vmatpush.bf16.msra.mxu0 0
    %453 = vmatpush.bf16.msra.mxu0 0
    %454 = vmatpush.bf16.msra.mxu0 0
    %455 = vmatpush.bf16.msra.mxu0 0
    %456 = vmatpush.bf16.msra.mxu0 %v161
    %457 = vmatpush.bf16.msra.mxu0 %v153
    %458 = vmatmul.bf16.gmra.mxu0 %v350
    %v459 = vpop.f32.mrf.mxu0
    %v460 = vadd.f32 0.0, %v459
    %v461 = vpop.f32.mrf.mxu0
    %v462 = vadd.f32 0.0, %v461
    %463 = vdwg.mxu0
    %v464 = vpack.c.bf16 %v364, %v362
    %v465 = vpack.c.bf16 %v378, %v376
    %v466 = vpack.c.bf16 %v392, %v390
    %v467 = vpack.c.bf16 %v406, %v404
    %v468 = vpack.c.bf16 %v420, %v418
    %v469 = vpack.c.bf16 %v434, %v432
    %v470 = vpack.c.bf16 %v448, %v446
    %v471 = vpack.c.bf16 %v462, %v460
    %v472 = vld [vmem:[%s3] sm:$0xf]
    %v473 = vld [vmem:[%s3 + $0x4] sm:$0xf]
    %v476 = vunpack.c.l.b16 %v472
    %v477 = vunpack.c.l.b16 %v473
    %v478 = vpack.c.b16 %v477, %v476
    %vm479 = vcmask 392192
    %v481 = vsel %vm479, %v478, 0
    %483 = vmatpush.bf16.msra.mxu0 0
    %484 = vmatpush.bf16.msra.mxu0 0
    %485 = vmatpush.bf16.msra.mxu0 0
    %486 = vmatpush.bf16.msra.mxu0 0
    %487 = vmatpush.bf16.msra.mxu0 0
    %488 = vmatpush.bf16.msra.mxu0 %v333
    %489 = vmatpush.bf16.msra.mxu0 %v325
    %490 = vmatpush.bf16.msra.mxu0 %v317
    %491 = vmatmul.bf16.gmra.mxu0 %v481
    %v492 = vpop.f32.mrf.mxu0
    %v493 = vadd.f32 0.0, %v492
    %v494 = vpop.f32.mrf.mxu0
    %v495 = vadd.f32 0.0, %v494
    %496 = vdwg.mxu0
    %497 = vmatpush.bf16.msra.mxu0 0
    %498 = vmatpush.bf16.msra.mxu0 0
    %499 = vmatpush.bf16.msra.mxu0 0
    %500 = vmatpush.bf16.msra.mxu0 0
    %501 = vmatpush.bf16.msra.mxu0 0
    %502 = vmatpush.bf16.msra.mxu0 %v334
    %503 = vmatpush.bf16.msra.mxu0 %v326
    %504 = vmatpush.bf16.msra.mxu0 %v318
    %505 = vmatmul.bf16.gmra.mxu0 %v481
    %v506 = vpop.f32.mrf.mxu0
    %v507 = vadd.f32 0.0, %v506
    %v508 = vpop.f32.mrf.mxu0
    %v509 = vadd.f32 0.0, %v508
    %510 = vdwg.mxu0
    %511 = vmatpush.bf16.msra.mxu0 0
    %512 = vmatpush.bf16.msra.mxu0 0
    %513 = vmatpush.bf16.msra.mxu0 0
    %514 = vmatpush.bf16.msra.mxu0 0
    %515 = vmatpush.bf16.msra.mxu0 0
    %516 = vmatpush.bf16.msra.mxu0 %v335
    %517 = vmatpush.bf16.msra.mxu0 %v327
    %518 = vmatpush.bf16.msra.mxu0 %v319
    %519 = vmatmul.bf16.gmra.mxu0 %v481
    %v520 = vpop.f32.mrf.mxu0
    %v521 = vadd.f32 0.0, %v520
    %v522 = vpop.f32.mrf.mxu0
    %v523 = vadd.f32 0.0, %v522
    %524 = vdwg.mxu0
    %525 = vmatpush.bf16.msra.mxu0 0
    %526 = vmatpush.bf16.msra.mxu0 0
    %527 = vmatpush.bf16.msra.mxu0 0
    %528 = vmatpush.bf16.msra.mxu0 0
    %529 = vmatpush.bf16.msra.mxu0 0
    %530 = vmatpush.bf16.msra.mxu0 %v336
    %531 = vmatpush.bf16.msra.mxu0 %v328
    %532 = vmatpush.bf16.msra.mxu0 %v320
    %533 = vmatmul.bf16.gmra.mxu0 %v481
    %v534 = vpop.f32.mrf.mxu0
    %v535 = vadd.f32 0.0, %v534
    %v536 = vpop.f32.mrf.mxu0
    %v537 = vadd.f32 0.0, %v536
    %538 = vdwg.mxu0
    %539 = vmatpush.bf16.msra.mxu0 0
    %540 = vmatpush.bf16.msra.mxu0 0
    %541 = vmatpush.bf16.msra.mxu0 0
    %542 = vmatpush.bf16.msra.mxu0 0
    %543 = vmatpush.bf16.msra.mxu0 0
    %544 = vmatpush.bf16.msra.mxu0 %v337
    %545 = vmatpush.bf16.msra.mxu0 %v329
    %546 = vmatpush.bf16.msra.mxu0 %v321
    %547 = vmatmul.bf16.gmra.mxu0 %v481
    %v548 = vpop.f32.mrf.mxu0
    %v549 = vadd.f32 0.0, %v548
    %v550 = vpop.f32.mrf.mxu0
    %v551 = vadd.f32 0.0, %v550
    %552 = vdwg.mxu0
    %553 = vmatpush.bf16.msra.mxu0 0
    %554 = vmatpush.bf16.msra.mxu0 0
    %555 = vmatpush.bf16.msra.mxu0 0
    %556 = vmatpush.bf16.msra.mxu0 0
    %557 = vmatpush.bf16.msra.mxu0 0
    %558 = vmatpush.bf16.msra.mxu0 %v338
    %559 = vmatpush.bf16.msra.mxu0 %v330
    %560 = vmatpush.bf16.msra.mxu0 %v322
    %561 = vmatmul.bf16.gmra.mxu0 %v481
    %v562 = vpop.f32.mrf.mxu0
    %v563 = vadd.f32 0.0, %v562
    %v564 = vpop.f32.mrf.mxu0
    %v565 = vadd.f32 0.0, %v564
    %566 = vdwg.mxu0
    %567 = vmatpush.bf16.msra.mxu0 0
    %568 = vmatpush.bf16.msra.mxu0 0
    %569 = vmatpush.bf16.msra.mxu0 0
    %570 = vmatpush.bf16.msra.mxu0 0
    %571 = vmatpush.bf16.msra.mxu0 0
    %572 = vmatpush.bf16.msra.mxu0 %v339
    %573 = vmatpush.bf16.msra.mxu0 %v331
    %574 = vmatpush.bf16.msra.mxu0 %v323
    %575 = vmatmul.bf16.gmra.mxu0 %v481
    %v576 = vpop.f32.mrf.mxu0
    %v577 = vadd.f32 0.0, %v576
    %v578 = vpop.f32.mrf.mxu0
    %v579 = vadd.f32 0.0, %v578
    %580 = vdwg.mxu0
    %581 = vmatpush.bf16.msra.mxu0 0
    %582 = vmatpush.bf16.msra.mxu0 0
    %583 = vmatpush.bf16.msra.mxu0 0
    %584 = vmatpush.bf16.msra.mxu0 0
    %585 = vmatpush.bf16.msra.mxu0 0
    %586 = vmatpush.bf16.msra.mxu0 %v340
    %587 = vmatpush.bf16.msra.mxu0 %v332
    %588 = vmatpush.bf16.msra.mxu0 %v324
    %589 = vmatmul.bf16.gmra.mxu0 %v481
    %v590 = vpop.f32.mrf.mxu0
    %v591 = vadd.f32 0.0, %v590
    %v592 = vpop.f32.mrf.mxu0
    %v593 = vadd.f32 0.0, %v592
    %594 = vdwg.mxu0
    %v595 = vpack.c.bf16 %v495, %v493
    %v596 = vpack.c.bf16 %v509, %v507
    %v597 = vpack.c.bf16 %v523, %v521
    %v598 = vpack.c.bf16 %v537, %v535
    %v599 = vpack.c.bf16 %v551, %v549
    %v600 = vpack.c.bf16 %v565, %v563
    %v601 = vpack.c.bf16 %v579, %v577
    %v602 = vpack.c.bf16 %v593, %v591
    %v603 = vld [vmem:[%s4] sm:$0xf]
    %v604 = vld [vmem:[%s4 + $0x4] sm:$0xf]
    %v605 = vld [vmem:[%s4 + $0x8] sm:$0xf]
    %v606 = vld [vmem:[%s4 + $0xc] sm:$0xf]
    %v607 = vld [vmem:[%s5] sm:$0xf]
    %v608 = vld [vmem:[%s5 + $0x4] sm:$0xf]
    %v609 = vld [vmem:[%s5 + $0x8] sm:$0xf]
    %v610 = vld [vmem:[%s5 + $0xc] sm:$0xf]
    %v615 = vunpack.c.l.b16 %v607
    %v616 = vunpack.c.l.b16 %v608
    %v617 = vunpack.c.l.b16 %v609
    %v618 = vunpack.c.l.b16 %v610
    %v619 = vpack.c.b16 %v616, %v615
    %v620 = vpack.c.b16 %v618, %v617
    %vm621 = vcmask 130048
    %v623 = vsel %vm621, %v619, 0
    %v626 = vsel %vm621, %v620, 0
    %628 = vmatpush.bf16.msra.mxu0 0
    %629 = vmatpush.bf16.msra.mxu0 0
    %630 = vmatpush.bf16.msra.mxu0 0
    %631 = vmatpush.bf16.msra.mxu0 0
    %632 = vmatpush.bf16.msra.mxu0 0
    %633 = vmatpush.bf16.msra.mxu0 0
    %634 = vmatpush.bf16.msra.mxu0 0
    %635 = vmatpush.bf16.msra.mxu0 %v595
    %636 = vmatmul.bf16.gmra.mxu0 %v623
    %v637 = vpop.f32.mrf.mxu0
    %v638 = vadd.f32 0.0, %v637
    %v639 = vpop.f32.mrf.mxu0
    %v640 = vadd.f32 0.0, %v639
    %641 = vmatmul.bf16.gmra.mxu0 %v626
    %v642 = vpop.f32.mrf.mxu0
    %v643 = vadd.f32 0.0, %v642
    %v644 = vpop.f32.mrf.mxu0
    %v645 = vadd.f32 0.0, %v644
    %646 = vdwg.mxu0
    %647 = vmatpush.bf16.msra.mxu0 0
    %648 = vmatpush.bf16.msra.mxu0 0
    %649 = vmatpush.bf16.msra.mxu0 0
    %650 = vmatpush.bf16.msra.mxu0 0
    %651 = vmatpush.bf16.msra.mxu0 0
    %652 = vmatpush.bf16.msra.mxu0 0
    %653 = vmatpush.bf16.msra.mxu0 0
    %654 = vmatpush.bf16.msra.mxu0 %v596
    %655 = vmatmul.bf16.gmra.mxu0 %v623
    %v656 = vpop.f32.mrf.mxu0
    %v657 = vadd.f32 0.0, %v656
    %v658 = vpop.f32.mrf.mxu0
    %v659 = vadd.f32 0.0, %v658
    %660 = vmatmul.bf16.gmra.mxu0 %v626
    %v661 = vpop.f32.mrf.mxu0
    %v662 = vadd.f32 0.0, %v661
    %v663 = vpop.f32.mrf.mxu0
    %v664 = vadd.f32 0.0, %v663
    %665 = vdwg.mxu0
    %666 = vmatpush.bf16.msra.mxu0 0
    %667 = vmatpush.bf16.msra.mxu0 0
    %668 = vmatpush.bf16.msra.mxu0 0
    %669 = vmatpush.bf16.msra.mxu0 0
    %670 = vmatpush.bf16.msra.mxu0 0
    %671 = vmatpush.bf16.msra.mxu0 0
    %672 = vmatpush.bf16.msra.mxu0 0
    %673 = vmatpush.bf16.msra.mxu0 %v597
    %674 = vmatmul.bf16.gmra.mxu0 %v623
    %v675 = vpop.f32.mrf.mxu0
    %v676 = vadd.f32 0.0, %v675
    %v677 = vpop.f32.mrf.mxu0
    %v678 = vadd.f32 0.0, %v677
    %679 = vmatmul.bf16.gmra.mxu0 %v626
    %v680 = vpop.f32.mrf.mxu0
    %v681 = vadd.f32 0.0, %v680
    %v682 = vpop.f32.mrf.mxu0
    %v683 = vadd.f32 0.0, %v682
    %684 = vdwg.mxu0
    %685 = vmatpush.bf16.msra.mxu0 0
    %686 = vmatpush.bf16.msra.mxu0 0
    %687 = vmatpush.bf16.msra.mxu0 0
    %688 = vmatpush.bf16.msra.mxu0 0
    %689 = vmatpush.bf16.msra.mxu0 0
    %690 = vmatpush.bf16.msra.mxu0 0
    %691 = vmatpush.bf16.msra.mxu0 0
    %692 = vmatpush.bf16.msra.mxu0 %v598
    %693 = vmatmul.bf16.gmra.mxu0 %v623
    %v694 = vpop.f32.mrf.mxu0
    %v695 = vadd.f32 0.0, %v694
    %v696 = vpop.f32.mrf.mxu0
    %v697 = vadd.f32 0.0, %v696
    %698 = vmatmul.bf16.gmra.mxu0 %v626
    %v699 = vpop.f32.mrf.mxu0
    %v700 = vadd.f32 0.0, %v699
    %v701 = vpop.f32.mrf.mxu0
    %v702 = vadd.f32 0.0, %v701
    %703 = vdwg.mxu0
    %704 = vmatpush.bf16.msra.mxu0 0
    %705 = vmatpush.bf16.msra.mxu0 0
    %706 = vmatpush.bf16.msra.mxu0 0
    %707 = vmatpush.bf16.msra.mxu0 0
    %708 = vmatpush.bf16.msra.mxu0 0
    %709 = vmatpush.bf16.msra.mxu0 0
    %710 = vmatpush.bf16.msra.mxu0 0
    %711 = vmatpush.bf16.msra.mxu0 %v599
    %712 = vmatmul.bf16.gmra.mxu0 %v623
    %v713 = vpop.f32.mrf.mxu0
    %v714 = vadd.f32 0.0, %v713
    %v715 = vpop.f32.mrf.mxu0
    %v716 = vadd.f32 0.0, %v715
    %717 = vmatmul.bf16.gmra.mxu0 %v626
    %v718 = vpop.f32.mrf.mxu0
    %v719 = vadd.f32 0.0, %v718
    %v720 = vpop.f32.mrf.mxu0
    %v721 = vadd.f32 0.0, %v720
    %722 = vdwg.mxu0
    %723 = vmatpush.bf16.msra.mxu0 0
    %724 = vmatpush.bf16.msra.mxu0 0
    %725 = vmatpush.bf16.msra.mxu0 0
    %726 = vmatpush.bf16.msra.mxu0 0
    %727 = vmatpush.bf16.msra.mxu0 0
    %728 = vmatpush.bf16.msra.mxu0 0
    %729 = vmatpush.bf16.msra.mxu0 0
    %730 = vmatpush.bf16.msra.mxu0 %v600
    %731 = vmatmul.bf16.gmra.mxu0 %v623
    %v732 = vpop.f32.mrf.mxu0
    %v733 = vadd.f32 0.0, %v732
    %v734 = vpop.f32.mrf.mxu0
    %v735 = vadd.f32 0.0, %v734
    %736 = vmatmul.bf16.gmra.mxu0 %v626
    %v737 = vpop.f32.mrf.mxu0
    %v738 = vadd.f32 0.0, %v737
    %v739 = vpop.f32.mrf.mxu0
    %v740 = vadd.f32 0.0, %v739
    %741 = vdwg.mxu0
    %742 = vmatpush.bf16.msra.mxu0 0
    %743 = vmatpush.bf16.msra.mxu0 0
    %744 = vmatpush.bf16.msra.mxu0 0
    %745 = vmatpush.bf16.msra.mxu0 0
    %746 = vmatpush.bf16.msra.mxu0 0
    %747 = vmatpush.bf16.msra.mxu0 0
    %748 = vmatpush.bf16.msra.mxu0 0
    %749 = vmatpush.bf16.msra.mxu0 %v601
    %750 = vmatmul.bf16.gmra.mxu0 %v623
    %v751 = vpop.f32.mrf.mxu0
    %v752 = vadd.f32 0.0, %v751
    %v753 = vpop.f32.mrf.mxu0
    %v754 = vadd.f32 0.0, %v753
    %755 = vmatmul.bf16.gmra.mxu0 %v626
    %v756 = vpop.f32.mrf.mxu0
    %v757 = vadd.f32 0.0, %v756
    %v758 = vpop.f32.mrf.mxu0
    %v759 = vadd.f32 0.0, %v758
    %760 = vdwg.mxu0
    %761 = vmatpush.bf16.msra.mxu0 0
    %762 = vmatpush.bf16.msra.mxu0 0
    %763 = vmatpush.bf16.msra.mxu0 0
    %764 = vmatpush.bf16.msra.mxu0 0
    %765 = vmatpush.bf16.msra.mxu0 0
    %766 = vmatpush.bf16.msra.mxu0 0
    %767 = vmatpush.bf16.msra.mxu0 0
    %768 = vmatpush.bf16.msra.mxu0 %v602
    %769 = vmatmul.bf16.gmra.mxu0 %v623
    %v770 = vpop.f32.mrf.mxu0
    %v771 = vadd.f32 0.0, %v770
    %v772 = vpop.f32.mrf.mxu0
    %v773 = vadd.f32 0.0, %v772
    %774 = vmatmul.bf16.gmra.mxu0 %v626
    %v775 = vpop.f32.mrf.mxu0
    %v776 = vadd.f32 0.0, %v775
    %v777 = vpop.f32.mrf.mxu0
    %v778 = vadd.f32 0.0, %v777
    %779 = vdwg.mxu0
    %v784 = vunpack.c.l.b16 %v603
    %v785 = vunpack.c.l.b16 %v604
    %v786 = vunpack.c.l.b16 %v605
    %v787 = vunpack.c.l.b16 %v606
    %v788 = vpack.c.b16 %v785, %v784
    %v789 = vpack.c.b16 %v787, %v786
    %v791 = vsel %vm621, %v788, 0
    %v794 = vsel %vm621, %v789, 0
    %796 = vmatpush.bf16.msra.mxu0 0
    %797 = vmatpush.bf16.msra.mxu0 0
    %798 = vmatpush.bf16.msra.mxu0 0
    %799 = vmatpush.bf16.msra.mxu0 0
    %800 = vmatpush.bf16.msra.mxu0 0
    %801 = vmatpush.bf16.msra.mxu0 0
    %802 = vmatpush.bf16.msra.mxu0 0
    %803 = vmatpush.bf16.msra.mxu0 %v464
    %804 = vmatmul.bf16.gmra.mxu0 %v791
    %v805 = vpop.f32.mrf.mxu0
    %v806 = vadd.f32 %v638, %v805
    %v807 = vpop.f32.mrf.mxu0
    %v808 = vadd.f32 %v640, %v807
    %809 = vmatmul.bf16.gmra.mxu0 %v794
    %v810 = vpop.f32.mrf.mxu0
    %v811 = vadd.f32 %v643, %v810
    %v812 = vpop.f32.mrf.mxu0
    %v813 = vadd.f32 %v645, %v812
    %814 = vdwg.mxu0
    %815 = vmatpush.bf16.msra.mxu0 0
    %816 = vmatpush.bf16.msra.mxu0 0
    %817 = vmatpush.bf16.msra.mxu0 0
    %818 = vmatpush.bf16.msra.mxu0 0
    %819 = vmatpush.bf16.msra.mxu0 0
    %820 = vmatpush.bf16.msra.mxu0 0
    %821 = vmatpush.bf16.msra.mxu0 0
    %822 = vmatpush.bf16.msra.mxu0 %v465
    %823 = vmatmul.bf16.gmra.mxu0 %v791
    %v824 = vpop.f32.mrf.mxu0
    %v825 = vadd.f32 %v657, %v824
    %v826 = vpop.f32.mrf.mxu0
    %v827 = vadd.f32 %v659, %v826
    %828 = vmatmul.bf16.gmra.mxu0 %v794
    %v829 = vpop.f32.mrf.mxu0
    %v830 = vadd.f32 %v662, %v829
    %v831 = vpop.f32.mrf.mxu0
    %v832 = vadd.f32 %v664, %v831
    %833 = vdwg.mxu0
    %834 = vmatpush.bf16.msra.mxu0 0
    %835 = vmatpush.bf16.msra.mxu0 0
    %836 = vmatpush.bf16.msra.mxu0 0
    %837 = vmatpush.bf16.msra.mxu0 0
    %838 = vmatpush.bf16.msra.mxu0 0
    %839 = vmatpush.bf16.msra.mxu0 0
    %840 = vmatpush.bf16.msra.mxu0 0
    %841 = vmatpush.bf16.msra.mxu0 %v466
    %842 = vmatmul.bf16.gmra.mxu0 %v791
    %v843 = vpop.f32.mrf.mxu0
    %v844 = vadd.f32 %v676, %v843
    %v845 = vpop.f32.mrf.mxu0
    %v846 = vadd.f32 %v678, %v845
    %847 = vmatmul.bf16.gmra.mxu0 %v794
    %v848 = vpop.f32.mrf.mxu0
    %v849 = vadd.f32 %v681, %v848
    %v850 = vpop.f32.mrf.mxu0
    %v851 = vadd.f32 %v683, %v850
    %852 = vdwg.mxu0
    %853 = vmatpush.bf16.msra.mxu0 0
    %854 = vmatpush.bf16.msra.mxu0 0
    %855 = vmatpush.bf16.msra.mxu0 0
    %856 = vmatpush.bf16.msra.mxu0 0
    %857 = vmatpush.bf16.msra.mxu0 0
    %858 = vmatpush.bf16.msra.mxu0 0
    %859 = vmatpush.bf16.msra.mxu0 0
    %860 = vmatpush.bf16.msra.mxu0 %v467
    %861 = vmatmul.bf16.gmra.mxu0 %v791
    %v862 = vpop.f32.mrf.mxu0
    %v863 = vadd.f32 %v695, %v862
    %v864 = vpop.f32.mrf.mxu0
    %v865 = vadd.f32 %v697, %v864
    %866 = vmatmul.bf16.gmra.mxu0 %v794
    %v867 = vpop.f32.mrf.mxu0
    %v868 = vadd.f32 %v700, %v867
    %v869 = vpop.f32.mrf.mxu0
    %v870 = vadd.f32 %v702, %v869
    %871 = vdwg.mxu0
    %872 = vmatpush.bf16.msra.mxu0 0
    %873 = vmatpush.bf16.msra.mxu0 0
    %874 = vmatpush.bf16.msra.mxu0 0
    %875 = vmatpush.bf16.msra.mxu0 0
    %876 = vmatpush.bf16.msra.mxu0 0
    %877 = vmatpush.bf16.msra.mxu0 0
    %878 = vmatpush.bf16.msra.mxu0 0
    %879 = vmatpush.bf16.msra.mxu0 %v468
    %880 = vmatmul.bf16.gmra.mxu0 %v791
    %v881 = vpop.f32.mrf.mxu0
    %v882 = vadd.f32 %v714, %v881
    %v883 = vpop.f32.mrf.mxu0
    %v884 = vadd.f32 %v716, %v883
    %885 = vmatmul.bf16.gmra.mxu0 %v794
    %v886 = vpop.f32.mrf.mxu0
    %v887 = vadd.f32 %v719, %v886
    %v888 = vpop.f32.mrf.mxu0
    %v889 = vadd.f32 %v721, %v888
    %890 = vdwg.mxu0
    %891 = vmatpush.bf16.msra.mxu0 0
    %892 = vmatpush.bf16.msra.mxu0 0
    %893 = vmatpush.bf16.msra.mxu0 0
    %894 = vmatpush.bf16.msra.mxu0 0
    %895 = vmatpush.bf16.msra.mxu0 0
    %896 = vmatpush.bf16.msra.mxu0 0
    %897 = vmatpush.bf16.msra.mxu0 0
    %898 = vmatpush.bf16.msra.mxu0 %v469
    %899 = vmatmul.bf16.gmra.mxu0 %v791
    %v900 = vpop.f32.mrf.mxu0
    %v901 = vadd.f32 %v733, %v900
    %v902 = vpop.f32.mrf.mxu0
    %v903 = vadd.f32 %v735, %v902
    %904 = vmatmul.bf16.gmra.mxu0 %v794
    %v905 = vpop.f32.mrf.mxu0
    %v906 = vadd.f32 %v738, %v905
    %v907 = vpop.f32.mrf.mxu0
    %v908 = vadd.f32 %v740, %v907
    %909 = vdwg.mxu0
    %910 = vmatpush.bf16.msra.mxu0 0
    %911 = vmatpush.bf16.msra.mxu0 0
    %912 = vmatpush.bf16.msra.mxu0 0
    %913 = vmatpush.bf16.msra.mxu0 0
    %914 = vmatpush.bf16.msra.mxu0 0
    %915 = vmatpush.bf16.msra.mxu0 0
    %916 = vmatpush.bf16.msra.mxu0 0
    %917 = vmatpush.bf16.msra.mxu0 %v470
    %918 = vmatmul.bf16.gmra.mxu0 %v791
    %v919 = vpop.f32.mrf.mxu0
    %v920 = vadd.f32 %v752, %v919
    %v921 = vpop.f32.mrf.mxu0
    %v922 = vadd.f32 %v754, %v921
    %923 = vmatmul.bf16.gmra.mxu0 %v794
    %v924 = vpop.f32.mrf.mxu0
    %v925 = vadd.f32 %v757, %v924
    %v926 = vpop.f32.mrf.mxu0
    %v927 = vadd.f32 %v759, %v926
    %928 = vdwg.mxu0
    %929 = vmatpush.bf16.msra.mxu0 0
    %930 = vmatpush.bf16.msra.mxu0 0
    %931 = vmatpush.bf16.msra.mxu0 0
    %932 = vmatpush.bf16.msra.mxu0 0
    %933 = vmatpush.bf16.msra.mxu0 0
    %934 = vmatpush.bf16.msra.mxu0 0
    %935 = vmatpush.bf16.msra.mxu0 0
    %936 = vmatpush.bf16.msra.mxu0 %v471
    %937 = vmatmul.bf16.gmra.mxu0 %v791
    %v938 = vpop.f32.mrf.mxu0
    %v939 = vadd.f32 %v771, %v938
    %v940 = vpop.f32.mrf.mxu0
    %v941 = vadd.f32 %v773, %v940
    %942 = vmatmul.bf16.gmra.mxu0 %v794
    %v943 = vpop.f32.mrf.mxu0
    %v944 = vadd.f32 %v776, %v943
    %v945 = vpop.f32.mrf.mxu0
    %v946 = vadd.f32 %v778, %v945
    %947 = vdwg.mxu0
    %v948 = vld [vmem:[%s6] sm:$0xff]
    %v949 = vld [vmem:[%s6 + $0x8] sm:$0xff]
    %v950 = vld [vmem:[%s6 + $0x10] sm:$0xff]
    %v951 = vld [vmem:[%s6 + $0x18] sm:$0xff]
    %953 = vset.pattern.permute.xlu0 0
    %954 = vperm.xlu0 %953, %v948
    %v955 = vpop.permute.xlu0 %954
    %958 = vset.pattern.permute.xlu0 0
    %959 = vperm.xlu0 %958, %v949
    %v960 = vpop.permute.xlu0 %959
    %963 = vset.pattern.permute.xlu0 0
    %964 = vperm.xlu0 %963, %v950
    %v965 = vpop.permute.xlu0 %964
    %968 = vset.pattern.permute.xlu0 0
    %969 = vperm.xlu0 %968, %v951
    %v970 = vpop.permute.xlu0 %969
    %v972 = vadd.f32 %v806, %v955
    %v973 = vadd.f32 %v825, %v955
    %v974 = vadd.f32 %v844, %v955
    %v975 = vadd.f32 %v863, %v955
    %v976 = vadd.f32 %v882, %v955
    %v977 = vadd.f32 %v901, %v955
    %v978 = vadd.f32 %v920, %v955
    %v979 = vadd.f32 %v939, %v955
    %v980 = vadd.f32 %v808, %v960
    %v981 = vadd.f32 %v827, %v960
    %v982 = vadd.f32 %v846, %v960
    %v983 = vadd.f32 %v865, %v960
    %v984 = vadd.f32 %v884, %v960
    %v985 = vadd.f32 %v903, %v960
    %v986 = vadd.f32 %v922, %v960
    %v987 = vadd.f32 %v941, %v960
    %v988 = vadd.f32 %v811, %v965
    %v989 = vadd.f32 %v830, %v965
    %v990 = vadd.f32 %v849, %v965
    %v991 = vadd.f32 %v868, %v965
    %v992 = vadd.f32 %v887, %v965
    %v993 = vadd.f32 %v906, %v965
    %v994 = vadd.f32 %v925, %v965
    %v995 = vadd.f32 %v944, %v965
    %v996 = vadd.f32 %v813, %v970
    %v997 = vadd.f32 %v832, %v970
    %v998 = vadd.f32 %v851, %v970
    %v999 = vadd.f32 %v870, %v970
    %v1000 = vadd.f32 %v889, %v970
    %v1001 = vadd.f32 %v908, %v970
    %v1002 = vadd.f32 %v927, %v970
    %v1003 = vadd.f32 %v946, %v970
    %v1004 = vmax.f32 %v972, 0.0
    %v1005 = vmax.f32 %v973, 0.0
    %v1006 = vmax.f32 %v974, 0.0
    %v1007 = vmax.f32 %v975, 0.0
    %v1008 = vmax.f32 %v976, 0.0
    %v1009 = vmax.f32 %v977, 0.0
    %v1010 = vmax.f32 %v978, 0.0
    %v1011 = vmax.f32 %v979, 0.0
    %v1012 = vmax.f32 %v980, 0.0
    %v1013 = vmax.f32 %v981, 0.0
    %v1014 = vmax.f32 %v982, 0.0
    %v1015 = vmax.f32 %v983, 0.0
    %v1016 = vmax.f32 %v984, 0.0
    %v1017 = vmax.f32 %v985, 0.0
    %v1018 = vmax.f32 %v986, 0.0
    %v1019 = vmax.f32 %v987, 0.0
    %v1020 = vmax.f32 %v988, 0.0
    %v1021 = vmax.f32 %v989, 0.0
    %v1022 = vmax.f32 %v990, 0.0
    %v1023 = vmax.f32 %v991, 0.0
    %v1024 = vmax.f32 %v992, 0.0
    %v1025 = vmax.f32 %v993, 0.0
    %v1026 = vmax.f32 %v994, 0.0
    %v1027 = vmax.f32 %v995, 0.0
    %v1028 = vmax.f32 %v996, 0.0
    %v1029 = vmax.f32 %v997, 0.0
    %v1030 = vmax.f32 %v998, 0.0
    %v1031 = vmax.f32 %v999, 0.0
    %v1032 = vmax.f32 %v1000, 0.0
    %v1033 = vmax.f32 %v1001, 0.0
    %v1034 = vmax.f32 %v1002, 0.0
    %v1035 = vmax.f32 %v1003, 0.0
    %v1036 = vld [vmem:[%s7] sm:$0xff]
    %v1037 = vld [vmem:[%s7 + $0x8] sm:$0xff]
    %v1038 = vld [vmem:[%s7 + $0x10] sm:$0xff]
    %v1039 = vld [vmem:[%s7 + $0x18] sm:$0xff]
    %1041 = vset.pattern.permute.xlu0 0
    %1042 = vperm.xlu0 %1041, %v1036
    %v1043 = vpop.permute.xlu0 %1042
    %1046 = vset.pattern.permute.xlu0 0
    %1047 = vperm.xlu0 %1046, %v1037
    %v1048 = vpop.permute.xlu0 %1047
    %1051 = vset.pattern.permute.xlu0 0
    %1052 = vperm.xlu0 %1051, %v1038
    %v1053 = vpop.permute.xlu0 %1052
    %1056 = vset.pattern.permute.xlu0 0
    %1057 = vperm.xlu0 %1056, %v1039
    %v1058 = vpop.permute.xlu0 %1057
    %v1060 = vmul.f32 %v1004, %v1043
    %v1061 = vmul.f32 %v1005, %v1043
    %v1062 = vmul.f32 %v1006, %v1043
    %v1063 = vmul.f32 %v1007, %v1043
    %v1064 = vmul.f32 %v1008, %v1043
    %v1065 = vmul.f32 %v1009, %v1043
    %v1066 = vmul.f32 %v1010, %v1043
    %v1067 = vmul.f32 %v1011, %v1043
    %v1068 = vmul.f32 %v1012, %v1048
    %v1069 = vmul.f32 %v1013, %v1048
    %v1070 = vmul.f32 %v1014, %v1048
    %v1071 = vmul.f32 %v1015, %v1048
    %v1072 = vmul.f32 %v1016, %v1048
    %v1073 = vmul.f32 %v1017, %v1048
    %v1074 = vmul.f32 %v1018, %v1048
    %v1075 = vmul.f32 %v1019, %v1048
    %v1076 = vmul.f32 %v1020, %v1053
    %v1077 = vmul.f32 %v1021, %v1053
    %v1078 = vmul.f32 %v1022, %v1053
    %v1079 = vmul.f32 %v1023, %v1053
    %v1080 = vmul.f32 %v1024, %v1053
    %v1081 = vmul.f32 %v1025, %v1053
    %v1082 = vmul.f32 %v1026, %v1053
    %v1083 = vmul.f32 %v1027, %v1053
    %v1084 = vmul.f32 %v1028, %v1058
    %v1085 = vmul.f32 %v1029, %v1058
    %v1086 = vmul.f32 %v1030, %v1058
    %v1087 = vmul.f32 %v1031, %v1058
    %v1088 = vmul.f32 %v1032, %v1058
    %v1089 = vmul.f32 %v1033, %v1058
    %v1090 = vmul.f32 %v1034, %v1058
    %v1091 = vmul.f32 %v1035, %v1058
    %v1092 = vadd.f32 %v1060, %v1068
    %v1093 = vadd.f32 %v1092, %v1076
    %v1094 = vadd.f32 %v1093, %v1084
    %v1095 = vrot.slane %v1094, 4
    %v1096 = vadd.f32 %v1094, %v1095
    %v1097 = vrot.slane %v1096, 2
    %v1098 = vadd.f32 %v1096, %v1097
    %v1099 = vrot.slane %v1098, 1
    %v1100 = vadd.f32 %v1098, %v1099
    %v1101 = vadd.f32 %v1061, %v1069
    %v1102 = vadd.f32 %v1101, %v1077
    %v1103 = vadd.f32 %v1102, %v1085
    %v1104 = vrot.slane %v1103, 4
    %v1105 = vadd.f32 %v1103, %v1104
    %v1106 = vrot.slane %v1105, 2
    %v1107 = vadd.f32 %v1105, %v1106
    %v1108 = vrot.slane %v1107, 1
    %v1109 = vadd.f32 %v1107, %v1108
    %v1110 = vadd.f32 %v1062, %v1070
    %v1111 = vadd.f32 %v1110, %v1078
    %v1112 = vadd.f32 %v1111, %v1086
    %v1113 = vrot.slane %v1112, 4
    %v1114 = vadd.f32 %v1112, %v1113
    %v1115 = vrot.slane %v1114, 2
    %v1116 = vadd.f32 %v1114, %v1115
    %v1117 = vrot.slane %v1116, 1
    %v1118 = vadd.f32 %v1116, %v1117
    %v1119 = vadd.f32 %v1063, %v1071
    %v1120 = vadd.f32 %v1119, %v1079
    %v1121 = vadd.f32 %v1120, %v1087
    %v1122 = vrot.slane %v1121, 4
    %v1123 = vadd.f32 %v1121, %v1122
    %v1124 = vrot.slane %v1123, 2
    %v1125 = vadd.f32 %v1123, %v1124
    %v1126 = vrot.slane %v1125, 1
    %v1127 = vadd.f32 %v1125, %v1126
    %v1128 = vadd.f32 %v1064, %v1072
    %v1129 = vadd.f32 %v1128, %v1080
    %v1130 = vadd.f32 %v1129, %v1088
    %v1131 = vrot.slane %v1130, 4
    %v1132 = vadd.f32 %v1130, %v1131
    %v1133 = vrot.slane %v1132, 2
    %v1134 = vadd.f32 %v1132, %v1133
    %v1135 = vrot.slane %v1134, 1
    %v1136 = vadd.f32 %v1134, %v1135
    %v1137 = vadd.f32 %v1065, %v1073
    %v1138 = vadd.f32 %v1137, %v1081
    %v1139 = vadd.f32 %v1138, %v1089
    %v1140 = vrot.slane %v1139, 4
    %v1141 = vadd.f32 %v1139, %v1140
    %v1142 = vrot.slane %v1141, 2
    %v1143 = vadd.f32 %v1141, %v1142
    %v1144 = vrot.slane %v1143, 1
    %v1145 = vadd.f32 %v1143, %v1144
    %v1146 = vadd.f32 %v1066, %v1074
    %v1147 = vadd.f32 %v1146, %v1082
    %v1148 = vadd.f32 %v1147, %v1090
    %v1149 = vrot.slane %v1148, 4
    %v1150 = vadd.f32 %v1148, %v1149
    %v1151 = vrot.slane %v1150, 2
    %v1152 = vadd.f32 %v1150, %v1151
    %v1153 = vrot.slane %v1152, 1
    %v1154 = vadd.f32 %v1152, %v1153
    %v1155 = vadd.f32 %v1067, %v1075
    %v1156 = vadd.f32 %v1155, %v1083
    %v1157 = vadd.f32 %v1156, %v1091
    %v1158 = vrot.slane %v1157, 4
    %v1159 = vadd.f32 %v1157, %v1158
    %v1160 = vrot.slane %v1159, 2
    %v1161 = vadd.f32 %v1159, %v1160
    %v1162 = vrot.slane %v1161, 1
    %v1163 = vadd.f32 %v1161, %v1162
    %v1164 = vld [vmem:[#allocation2] sm:$0x1]
    %1166 = vset.pattern.permute.xlu0 0
    %1167 = vperm.xlu0 %1166, %v1164
    %v1168 = vpop.permute.xlu0 %1167
    %v1170 = vperm.slane %v1168, 0
    %v1171 = vadd.f32 %v1100, %v1170
    %v1172 = vadd.f32 %v1109, %v1170
    %v1173 = vadd.f32 %v1118, %v1170
    %v1174 = vadd.f32 %v1127, %v1170
    %v1175 = vadd.f32 %v1136, %v1170
    %v1176 = vadd.f32 %v1145, %v1170
    %v1177 = vadd.f32 %v1154, %v1170
    %v1178 = vadd.f32 %v1163, %v1170
    %v1179 = vxor.u32 %v1171, 2147483648
    %v1180 = vxor.u32 %v1172, 2147483648
    %v1181 = vxor.u32 %v1173, 2147483648
    %v1182 = vxor.u32 %v1174, 2147483648
    %v1183 = vxor.u32 %v1175, 2147483648
    %v1184 = vxor.u32 %v1176, 2147483648
    %v1185 = vxor.u32 %v1177, 2147483648
    %v1186 = vxor.u32 %v1178, 2147483648
    %v1187 = vmul.f32 %v1179, 1.442695
    %v1188 = vpow.pop %v1187
    %v1189 = vmul.f32 %v1180, 1.442695
    %v1190 = vpow.pop %v1189
    %v1191 = vmul.f32 %v1181, 1.442695
    %v1192 = vpow.pop %v1191
    %v1193 = vmul.f32 %v1182, 1.442695
    %v1194 = vpow.pop %v1193
    %v1195 = vmul.f32 %v1183, 1.442695
    %v1196 = vpow.pop %v1195
    %v1197 = vmul.f32 %v1184, 1.442695
    %v1198 = vpow.pop %v1197
    %v1199 = vmul.f32 %v1185, 1.442695
    %v1200 = vpow.pop %v1199
    %v1201 = vmul.f32 %v1186, 1.442695
    %v1202 = vpow.pop %v1201
    %v1203 = vadd.f32 %v1188, 1.0
    %v1204 = vadd.f32 %v1190, 1.0
    %v1205 = vadd.f32 %v1192, 1.0
    %v1206 = vadd.f32 %v1194, 1.0
    %v1207 = vadd.f32 %v1196, 1.0
    %v1208 = vadd.f32 %v1198, 1.0
    %v1209 = vadd.f32 %v1200, 1.0
    %v1210 = vadd.f32 %v1202, 1.0
    %v1211 = vrcp.pop %v1203
    %v1212 = vmul.f32 %v1203, %v1211
    %v1213 = vsub.f32 1.0, %v1212
    %v1214 = vmul.f32 %v1211, %v1213
    %v1215 = vadd.f32 %v1211, %v1214
    %vm1216 = vweird.f32 %v1203
    %vm1217 = vweird.f32 %v1211
    %vm1218 = vmor %vm1216, %vm1217
    %v1219 = vsel %vm1218, %v1211, %v1215
    %v1220 = vand.u32 2147483647, %v1203
    %vm1221 = vcmp.eq.f32.partialorder %v1220, 8.507059e+37
    %v1222 = vand.u32 %v1203, 2147483648
    %v1223 = vor.u32 1.1754944e-38, %v1222
    %v1224 = vsel %vm1221, %v1223, %v1219
    %v1225 = vmul.f32 1.0, %v1224
    %v1226 = vrcp.pop %v1204
    %v1227 = vmul.f32 %v1204, %v1226
    %v1228 = vsub.f32 1.0, %v1227
    %v1229 = vmul.f32 %v1226, %v1228
    %v1230 = vadd.f32 %v1226, %v1229
    %vm1231 = vweird.f32 %v1204
    %vm1232 = vweird.f32 %v1226
    %vm1233 = vmor %vm1231, %vm1232
    %v1234 = vsel %vm1233, %v1226, %v1230
    %v1235 = vand.u32 2147483647, %v1204
    %vm1236 = vcmp.eq.f32.partialorder %v1235, 8.507059e+37
    %v1237 = vand.u32 %v1204, 2147483648
    %v1238 = vor.u32 1.1754944e-38, %v1237
    %v1239 = vsel %vm1236, %v1238, %v1234
    %v1240 = vmul.f32 1.0, %v1239
    %v1241 = vrcp.pop %v1205
    %v1242 = vmul.f32 %v1205, %v1241
    %v1243 = vsub.f32 1.0, %v1242
    %v1244 = vmul.f32 %v1241, %v1243
    %v1245 = vadd.f32 %v1241, %v1244
    %vm1246 = vweird.f32 %v1205
    %vm1247 = vweird.f32 %v1241
    %vm1248 = vmor %vm1246, %vm1247
    %v1249 = vsel %vm1248, %v1241, %v1245
    %v1250 = vand.u32 2147483647, %v1205
    %vm1251 = vcmp.eq.f32.partialorder %v1250, 8.507059e+37
    %v1252 = vand.u32 %v1205, 2147483648
    %v1253 = vor.u32 1.1754944e-38, %v1252
    %v1254 = vsel %vm1251, %v1253, %v1249
    %v1255 = vmul.f32 1.0, %v1254
    %v1256 = vrcp.pop %v1206
    %v1257 = vmul.f32 %v1206, %v1256
    %v1258 = vsub.f32 1.0, %v1257
    %v1259 = vmul.f32 %v1256, %v1258
    %v1260 = vadd.f32 %v1256, %v1259
    %vm1261 = vweird.f32 %v1206
    %vm1262 = vweird.f32 %v1256
    %vm1263 = vmor %vm1261, %vm1262
    %v1264 = vsel %vm1263, %v1256, %v1260
    %v1265 = vand.u32 2147483647, %v1206
    %vm1266 = vcmp.eq.f32.partialorder %v1265, 8.507059e+37
    %v1267 = vand.u32 %v1206, 2147483648
    %v1268 = vor.u32 1.1754944e-38, %v1267
    %v1269 = vsel %vm1266, %v1268, %v1264
    %v1270 = vmul.f32 1.0, %v1269
    %v1271 = vrcp.pop %v1207
    %v1272 = vmul.f32 %v1207, %v1271
    %v1273 = vsub.f32 1.0, %v1272
    %v1274 = vmul.f32 %v1271, %v1273
    %v1275 = vadd.f32 %v1271, %v1274
    %vm1276 = vweird.f32 %v1207
    %vm1277 = vweird.f32 %v1271
    %vm1278 = vmor %vm1276, %vm1277
    %v1279 = vsel %vm1278, %v1271, %v1275
    %v1280 = vand.u32 2147483647, %v1207
    %vm1281 = vcmp.eq.f32.partialorder %v1280, 8.507059e+37
    %v1282 = vand.u32 %v1207, 2147483648
    %v1283 = vor.u32 1.1754944e-38, %v1282
    %v1284 = vsel %vm1281, %v1283, %v1279
    %v1285 = vmul.f32 1.0, %v1284
    %v1286 = vrcp.pop %v1208
    %v1287 = vmul.f32 %v1208, %v1286
    %v1288 = vsub.f32 1.0, %v1287
    %v1289 = vmul.f32 %v1286, %v1288
    %v1290 = vadd.f32 %v1286, %v1289
    %vm1291 = vweird.f32 %v1208
    %vm1292 = vweird.f32 %v1286
    %vm1293 = vmor %vm1291, %vm1292
    %v1294 = vsel %vm1293, %v1286, %v1290
    %v1295 = vand.u32 2147483647, %v1208
    %vm1296 = vcmp.eq.f32.partialorder %v1295, 8.507059e+37
    %v1297 = vand.u32 %v1208, 2147483648
    %v1298 = vor.u32 1.1754944e-38, %v1297
    %v1299 = vsel %vm1296, %v1298, %v1294
    %v1300 = vmul.f32 1.0, %v1299
    %v1301 = vrcp.pop %v1209
    %v1302 = vmul.f32 %v1209, %v1301
    %v1303 = vsub.f32 1.0, %v1302
    %v1304 = vmul.f32 %v1301, %v1303
    %v1305 = vadd.f32 %v1301, %v1304
    %vm1306 = vweird.f32 %v1209
    %vm1307 = vweird.f32 %v1301
    %vm1308 = vmor %vm1306, %vm1307
    %v1309 = vsel %vm1308, %v1301, %v1305
    %v1310 = vand.u32 2147483647, %v1209
    %vm1311 = vcmp.eq.f32.partialorder %v1310, 8.507059e+37
    %v1312 = vand.u32 %v1209, 2147483648
    %v1313 = vor.u32 1.1754944e-38, %v1312
    %v1314 = vsel %vm1311, %v1313, %v1309
    %v1315 = vmul.f32 1.0, %v1314
    %v1316 = vrcp.pop %v1210
    %v1317 = vmul.f32 %v1210, %v1316
    %v1318 = vsub.f32 1.0, %v1317
    %v1319 = vmul.f32 %v1316, %v1318
    %v1320 = vadd.f32 %v1316, %v1319
    %vm1321 = vweird.f32 %v1210
    %vm1322 = vweird.f32 %v1316
    %vm1323 = vmor %vm1321, %vm1322
    %v1324 = vsel %vm1323, %v1316, %v1320
    %v1325 = vand.u32 2147483647, %v1210
    %vm1326 = vcmp.eq.f32.partialorder %v1325, 8.507059e+37
    %v1327 = vand.u32 %v1210, 2147483648
    %v1328 = vor.u32 1.1754944e-38, %v1327
    %v1329 = vsel %vm1326, %v1328, %v1324
    %v1330 = vmul.f32 1.0, %v1329
    %v1339 = vrot.slane %v1240, 7
    %v1340 = vrot.slane %v1255, 6
    %v1341 = vrot.slane %v1270, 5
    %v1342 = vrot.slane %v1285, 4
    %v1343 = vrot.slane %v1300, 3
    %v1344 = vrot.slane %v1315, 2
    %v1345 = vrot.slane %v1330, 1
    %vm1346 = vcmask 1040384
    %v1347 = vsel %vm1346, %v1225, %v1339
    %vm1348 = vcmask 1042434
    %v1349 = vsel %vm1348, %v1340, %v1341
    %vm1350 = vcmask 1041408
    %v1351 = vsel %vm1350, %v1347, %v1349
    %vm1352 = vcmask 1044484
    %v1353 = vsel %vm1352, %v1342, %v1343
    %vm1354 = vcmask 1046534
    %v1355 = vsel %vm1354, %v1344, %v1345
    %vm1356 = vcmask 1045508
    %v1357 = vsel %vm1356, %v1353, %v1355
    %vm1358 = vcmask 1043456
    %v1359 = vsel %vm1358, %v1351, %v1357
    %1361 = vst [vmem:[#allocation3] sm:$0xff] %v1359
    // Predicated region
    $region38: #{tpu_custom_call.1} parent=1 // pred_check
      _
    $region39: #{tpu_custom_call.1} parent=1 // pred_check_branch
      %1363 = sbr.rel (0) target = $region41
    $region40: #{tpu_custom_call.1} parent=1 // pred_region
      %1365 = vsyncadd [#allocation4], 0
      %s1367 = sshll.u32 [#allocation3], 4
      %s1368 = int_to_ptr.vmem [resolvable:$true] %s1367
      %s1369 = sshll.u32 %s9, 4
      %s1370 = int_to_ptr.hbm [resolvable:$true] %s1369
      %1372 = dma.vmem_to_hbm [thread:$0]  %s1368, 128, %s1370, [#allocation4]
    $region41: #{tpu_custom_call.1} parent=1 // pred_fallthru
      _
    // Predicated region
    $region42: #{tpu_custom_call.1} parent=1 // pred_check
      _
    $region43: #{tpu_custom_call.1} parent=1 // pred_check_branch
      %1374 = sbr.rel (0) target = $region45
    $region44: #{tpu_custom_call.1} parent=1 // pred_region
      %1376 = dma.done [#allocation4], 128
    $region45: #{tpu_custom_call.1} parent=1 // pred_fallthru
      _
    %1377 = vsyncpa [#allocation4], 1

</llo_original>
